<compile_context>
chip_gen: v7x
topology: tpu7x:2x2x1
jax: 0.10.0
libtpu: 0.0.40
codegen_flags: <defaults>
</compile_context>

<pallas_src>
import functools
import numpy as np
import jax
import jax.numpy as jnp
from jax.experimental import pallas as pl
from jax.experimental.pallas import tpu as pltpu

# ----------------------- Decoder configuration (small demo shapes) -----------------------
CAPACITY = 32            # fc in_features (latent capacity)
CAPACITY_PAD = 128       # fc contraction zero-padded to a full lane width
HDIM = [1, 16, 32]       # channel schedule; decoder uses reversed(HDIM) = [32, 16, 1]
WINDOW_DIM = 16          # output image height/width
KERNEL_SIZE = 4
STRIDE = 2
PADDING = 1
RECON_LOSS = "BCE"       # -> final activation = Sigmoid

REVERSE_HDIM = list(reversed(HDIM))                       # [32, 16, 1]
LATENT_W = int(WINDOW_DIM / (len(HDIM) - 1) ** 2)         # 4
LATENT_OUT_DIM = LATENT_W ** 2 * HDIM[-1]                 # 512
MID_HW = (LATENT_W - 1) * STRIDE - 2 * PADDING + KERNEL_SIZE      # 8
MID_FLAT = MID_HW * MID_HW * REVERSE_HDIM[1]              # 1024
OUT_FLAT = WINDOW_DIM * WINDOW_DIM * HDIM[0]              # 256


def _round_up(v, m):
    return (v + m - 1) // m * m


# ----------------------------------- Pallas kernel ---------------------------------------
def _decoder_kernel(x_ref, wfc_ref, bfc_ref, m1_ref, b1_ref, m2_ref, b2_ref, o_ref):
    """Fused decoder for one batch tile.

    x_ref  : (BT, 128)   bf16  latent input, lane-padded from 32 -> 128 with zeros
    wfc_ref: (128, 512)  bf16  fc weight (in, out), rows 32..127 are zero
    bfc_ref: (1, 512)    f32   fc bias
    m1_ref : (512, 1024) bf16  ConvTranspose2d #1 folded to a dense linear map
                               (input NCHW-flat == torch view of fc output,
                                output NHWC-flat (h, w, c))
    b1_ref : (1, 1024)   f32   conv1 bias pre-broadcast to the NHWC-flat layout
    m2_ref : (1024, 256) bf16  final ConvTranspose2d folded to a dense linear map
    b2_ref : (1, 256)    f32   final bias pre-broadcast
    o_ref  : (BT, 256)   f32   flattened (h, w) sigmoid output (lane-dense)
    """
    # Linear + ReLU (bf16 MXU, f32 accumulate + epilogue)
    h = jnp.dot(x_ref[...], wfc_ref[...], preferred_element_type=jnp.float32)
    h = jnp.maximum(h + bfc_ref[...], 0.0)
    # ConvTranspose2d(32 -> 16, k4 s2 p1) + ReLU, as one lane-dense matmul
    h = jnp.dot(h.astype(jnp.bfloat16), m1_ref[...], preferred_element_type=jnp.float32)
    h = jnp.maximum(h + b1_ref[...], 0.0)
    # ConvTranspose2d(16 -> 1, k4 s2 p1) + Sigmoid, as one lane-dense matmul
    # TODO(synk): if large-batch MXU-bound operation becomes a target, replace this dense
    # fold (~16x structural zeros) with the stride-phase factorization of the transposed conv.
    h = jnp.dot(h.astype(jnp.bfloat16), m2_ref[...], preferred_element_type=jnp.float32)
    o_ref[...] = jax.nn.sigmoid(h + b2_ref[...]).astype(o_ref.dtype)


# ------------------------------ one-time weight preparation ------------------------------
def _convt_dense(w_pt, in_hw, stride, padding, input_layout):
    """Fold a PyTorch-semantics ConvTranspose2d (output_padding=0) into an exact
    dense matrix M of shape (in_hw*in_hw*Cin, H_out*W_out*Cout) such that
    flat_out = flat_in @ M.

    `input_layout` selects whether flat_in is (c, h, w)-ordered ('nchw', i.e.
    the torch .view of the fc output) or (h, w, c)-ordered ('nhwc', i.e. the
    column layout produced by a previous folded layer).  Output columns are
    always (h, w, c)-flat.  Built once at prepare time by pushing an identity
    basis through the equivalent dilated convolution (exact: inputs are 0/1).
    """
    c_in, c_out, k_h, k_w = w_pt.shape
    n_in = c_in * in_hw * in_hw
    eye = jnp.eye(n_in, dtype=jnp.float32)
    if input_layout == "nchw":
        basis = eye.reshape(n_in, c_in, in_hw, in_hw).transpose(0, 2, 3, 1)   # -> NHWC
    else:
        basis = eye.reshape(n_in, in_hw, in_hw, c_in)
    wf = jnp.transpose(w_pt[:, :, ::-1, ::-1], (2, 3, 0, 1))                  # (kH,kW,Cin,Cout)
    pad = k_h - 1 - padding
    y = jax.lax.conv_general_dilated(
        basis, wf, window_strides=(1, 1),
        padding=[(pad, pad), (pad, pad)], lhs_dilation=(stride, stride),
        dimension_numbers=("NHWC", "HWIO", "NHWC"),
        precision=jax.lax.Precision.HIGHEST)
    return y.reshape(n_in, -1)


def prepare_params(params):
    """Hoisted, one-time weight preprocessing (kept out of the forward path).

    Matmul operands are stored bf16 (native MXU path, half the weight bytes);
    biases stay f32 for the f32 epilogues.  The fc weight is zero-padded to a
    128-deep contraction so the x DMA / first MXU pass are lane-dense.
    """
    m1 = _convt_dense(params["conv1_w"], LATENT_W, STRIDE, PADDING, "nchw")   # (512, 1024)
    m2 = _convt_dense(params["final_w"], MID_HW, STRIDE, PADDING, "nhwc")     # (1024, 256)
    fc_w = jnp.zeros((CAPACITY_PAD, LATENT_OUT_DIM), jnp.float32)
    fc_w = fc_w.at[:CAPACITY].set(params["fc_w"])
    return {
        "fc_w": fc_w.astype(jnp.bfloat16),
        "fc_b": params["fc_b"].reshape(1, LATENT_OUT_DIM).astype(jnp.float32),
        "m1": m1.astype(jnp.bfloat16),
        "b1": jnp.tile(params["conv1_b"], MID_HW * MID_HW)
                 .reshape(1, MID_FLAT).astype(jnp.float32),
        "m2": m2.astype(jnp.bfloat16),
        "b2": jnp.tile(params["final_b"], WINDOW_DIM * WINDOW_DIM)
                 .reshape(1, OUT_FLAT).astype(jnp.float32),
    }


# --------------------------------------- forward -----------------------------------------
def decoder_forward(prep, x, *, batch_tile=None):
    """Fused decoder forward.

    batch_tile (multiple of 8) is the main tuning knob: by default the whole
    (sublane-padded) batch is processed in one grid step, capped at 256 rows per
    step for larger batches.  On v7x, pick batch_tile so the grid has >= 2 steps
    once the batch is non-trivial (2 TensorCores, "parallel" batch axis).
    """
    b, cap = x.shape
    assert cap == CAPACITY
    if batch_tile is None:
        batch_tile = min(_round_up(b, 8), 256)
    assert batch_tile % 8 == 0, "batch_tile must be a multiple of 8 (sublane)"
    bp = _round_up(b, batch_tile)

    # One cheap pad op: batch -> multiple of batch_tile (unmasked sublane access),
    # lanes 32 -> 128 (dense K for the fc matmul); cast to bf16 for the MXU.
    x_p = jnp.pad(x.astype(jnp.bfloat16),
                  ((0, bp - b), (0, CAPACITY_PAD - CAPACITY)))

    out_flat = pl.pallas_call(
        _decoder_kernel,
        out_shape=jax.ShapeDtypeStruct((bp, OUT_FLAT), jnp.float32),
        grid=(bp // batch_tile,),
        in_specs=[
            pl.BlockSpec((batch_tile, CAPACITY_PAD), lambda i: (i, 0)),
            pl.BlockSpec((CAPACITY_PAD, LATENT_OUT_DIM), lambda i: (0, 0)),
            pl.BlockSpec((1, LATENT_OUT_DIM), lambda i: (0, 0)),
            pl.BlockSpec((LATENT_OUT_DIM, MID_FLAT), lambda i: (0, 0)),
            pl.BlockSpec((1, MID_FLAT), lambda i: (0, 0)),
            pl.BlockSpec((MID_FLAT, OUT_FLAT), lambda i: (0, 0)),
            pl.BlockSpec((1, OUT_FLAT), lambda i: (0, 0)),
        ],
        out_specs=pl.BlockSpec((batch_tile, OUT_FLAT), lambda i: (i, 0)),
        compiler_params=pltpu.CompilerParams(
            dimension_semantics=("parallel",)),   # batch across cores on v7x
    )(x_p, prep["fc_w"], prep["fc_b"], prep["m1"], prep["b1"], prep["m2"], prep["b2"])

    # Flat column order is (h, w, c) with c == 1 -> NCHW is a pure relabeling.
    return out_flat[:b].reshape(b, HDIM[0], WINDOW_DIM, WINDOW_DIM)


# --------------------------------- parameter initialization ------------------------------
def init_params(key):
    ks = jax.random.split(key, 5)

    def init(k, fan_in, shape):
        return jax.random.normal(k, shape, jnp.float32) / np.sqrt(fan_in)

    return {
        # nn.Linear(capacity, latent_out_dim): stored already as (in, out)
        "fc_w": init(ks[0], CAPACITY, (CAPACITY, LATENT_OUT_DIM)),
        "fc_b": jnp.zeros((LATENT_OUT_DIM,), jnp.float32),
        # nn.ConvTranspose2d weight layout: (in_channels, out_channels, kH, kW)
        "conv1_w": init(ks[1], REVERSE_HDIM[0] * KERNEL_SIZE * KERNEL_SIZE,
                        (REVERSE_HDIM[0], REVERSE_HDIM[1], KERNEL_SIZE, KERNEL_SIZE)),
        "conv1_b": init(ks[2], REVERSE_HDIM[0] * KERNEL_SIZE * KERNEL_SIZE,
                        (REVERSE_HDIM[1],)),
        "final_w": init(ks[3], REVERSE_HDIM[1] * KERNEL_SIZE * KERNEL_SIZE,
                        (REVERSE_HDIM[1], REVERSE_HDIM[2], KERNEL_SIZE, KERNEL_SIZE)),
        "final_b": init(ks[4], REVERSE_HDIM[1] * KERNEL_SIZE * KERNEL_SIZE,
                        (REVERSE_HDIM[2],)),
    }


# ------------------------------ pure-JAX reference (check) -------------------------------
def _ref_convt(x_nhwc, w_pt, b, stride, padding):
    k_h = w_pt.shape[2]
    wf = jnp.transpose(w_pt[:, :, ::-1, ::-1], (2, 3, 0, 1))
    pad = k_h - 1 - padding
    y = jax.lax.conv_general_dilated(
        x_nhwc, wf, window_strides=(1, 1),
        padding=[(pad, pad), (pad, pad)], lhs_dilation=(stride, stride),
        dimension_numbers=("NHWC", "HWIO", "NHWC"),
        precision=jax.lax.Precision.HIGHEST)
    return y + b[None, None, None, :]


def decoder_forward_ref(params, x):
    # TODO(synk): the reference non-alt forward feeds the 2-D fc output straight into
    # ConvTranspose2d (would raise in PyTorch); we apply the reshape implied by
    # latent_out_dim = hdim[-1] * latent_window**2, i.e. (B, hdim[-1], lw, lw) NCHW.
    h = jnp.maximum(jnp.dot(x, params["fc_w"], precision=jax.lax.Precision.HIGHEST)
                    + params["fc_b"], 0.0)
    batch = x.shape[0]
    h = h.reshape(batch, HDIM[-1], LATENT_W, LATENT_W).transpose(0, 2, 3, 1)
    h = jnp.maximum(_ref_convt(h, params["conv1_w"], params["conv1_b"], STRIDE, PADDING), 0.0)
    h = jax.nn.sigmoid(_ref_convt(h, params["final_w"], params["final_b"], STRIDE, PADDING))
    return h.transpose(0, 3, 1, 2)


# -------------------------------------------- main ---------------------------------------
if __name__ == "__main__":
    key = jax.random.PRNGKey(0)
    pkey, xkey = jax.random.split(key)
    params = init_params(pkey)
    prep = jax.tree_util.tree_map(jax.block_until_ready, prepare_params(params))  # one-time

    # Small demo batch: whole (sublane-padded) batch in one grid step.
    x = jax.random.normal(xkey, (2, CAPACITY), jnp.float32)        # (batch, capacity)
    fwd = jax.jit(decoder_forward)
    out = jax.block_until_ready(fwd(prep, x))
    assert out.shape == (2, HDIM[0], WINDOW_DIM, WINDOW_DIM), out.shape
    ref = decoder_forward_ref(params, x)
    np.testing.assert_allclose(np.asarray(out), np.asarray(ref), rtol=2e-2, atol=2e-2)

    # Ragged batch + explicit tile -> exercises the padded, multi-step "parallel" grid.
    x2 = jax.random.normal(jax.random.PRNGKey(1), (37, CAPACITY), jnp.float32)
    fwd2 = jax.jit(functools.partial(decoder_forward, batch_tile=8))
    out2 = jax.block_until_ready(fwd2(prep, x2))
    assert out2.shape == (37, HDIM[0], WINDOW_DIM, WINDOW_DIM), out2.shape
    ref2 = decoder_forward_ref(params, x2)
    np.testing.assert_allclose(np.asarray(out2), np.asarray(ref2), rtol=2e-2, atol=2e-2)

    print("KERNEL_OK")
</pallas_src>

<mosaic_0001>
module attributes {stable_mosaic.version = 11 : i64} {
  func.func @_decoder_kernel(%arg0: i32, %arg1: memref<8x128xbf16, #tpu.memory_space<vmem>>, %arg2: memref<128x512xbf16, #tpu.memory_space<vmem>>, %arg3: memref<1x512xf32, #tpu.memory_space<vmem>>, %arg4: memref<512x1024xbf16, #tpu.memory_space<vmem>>, %arg5: memref<1x1024xf32, #tpu.memory_space<vmem>>, %arg6: memref<1024x256xbf16, #tpu.memory_space<vmem>>, %arg7: memref<1x256xf32, #tpu.memory_space<vmem>>, %arg8: memref<8x256xf32, #tpu.memory_space<vmem>>) attributes {dimension_semantics = [#tpu.dimension_semantics<parallel>], iteration_bounds = array<i64: 1>, scalar_prefetch = 0 : i64, scratch_operands = 0 : i64, tpu.core_type = #tpu.core_type<tc>, window_params = [{transform_indices = @transform_0, window_bounds = array<i64: 8, 128>}, {pipeline_mode = #tpu.pipeline_mode<synchronous>, transform_indices = @transform_1, window_bounds = array<i64: 128, 512>}, {pipeline_mode = #tpu.pipeline_mode<synchronous>, transform_indices = @transform_2, window_bounds = array<i64: 1, 512>}, {pipeline_mode = #tpu.pipeline_mode<synchronous>, transform_indices = @transform_3, window_bounds = array<i64: 512, 1024>}, {pipeline_mode = #tpu.pipeline_mode<synchronous>, transform_indices = @transform_4, window_bounds = array<i64: 1, 1024>}, {pipeline_mode = #tpu.pipeline_mode<synchronous>, transform_indices = @transform_5, window_bounds = array<i64: 1024, 256>}, {pipeline_mode = #tpu.pipeline_mode<synchronous>, transform_indices = @transform_6, window_bounds = array<i64: 1, 256>}, {transform_indices = @transform_7, window_bounds = array<i64: 8, 256>}]} {
    %c0 = arith.constant 0 : index
    %c0_0 = arith.constant 0 : index
    %0 = vector.load %arg1[%c0, %c0_0] : memref<8x128xbf16, #tpu.memory_space<vmem>>, vector<8x128xbf16>
    %c0_1 = arith.constant 0 : index
    %c0_2 = arith.constant 0 : index
    %1 = vector.load %arg2[%c0_1, %c0_2] : memref<128x512xbf16, #tpu.memory_space<vmem>>, vector<128x512xbf16>
    %cst = arith.constant dense<0.000000e+00> : vector<8x512xf32>
    %2 = tpu.matmul %0, %1, %cst {dimension_numbers = #tpu.dot_dimension_numbers<[1], [0], [0], [1], [0, 0, 1, 1], [], []>} : vector<8x128xbf16>, vector<128x512xbf16>, vector<8x512xf32> -> vector<8x512xf32>
    %c0_3 = arith.constant 0 : index
    %c0_4 = arith.constant 0 : index
    %3 = vector.load %arg3[%c0_3, %c0_4] : memref<1x512xf32, #tpu.memory_space<vmem>>, vector<1x512xf32>
    %4 = vector.broadcast %3 : vector<1x512xf32> to vector<8x512xf32>
    %5 = arith.addf %2, %4 : vector<8x512xf32>
    %cst_5 = arith.constant 0.000000e+00 : f32
    %6 = vector.broadcast %cst_5 : f32 to vector<8x512xf32>
    %7 = arith.maximumf %5, %6 : vector<8x512xf32>
    %8 = arith.truncf %7 : vector<8x512xf32> to vector<8x512xbf16>
    %c0_6 = arith.constant 0 : index
    %c0_7 = arith.constant 0 : index
    %9 = vector.load %arg4[%c0_6, %c0_7] : memref<512x1024xbf16, #tpu.memory_space<vmem>>, vector<512x1024xbf16>
    %cst_8 = arith.constant dense<0.000000e+00> : vector<8x1024xf32>
    %10 = tpu.matmul %8, %9, %cst_8 {dimension_numbers = #tpu.dot_dimension_numbers<[1], [0], [0], [1], [0, 0, 1, 1], [], []>} : vector<8x512xbf16>, vector<512x1024xbf16>, vector<8x1024xf32> -> vector<8x1024xf32>
    %c0_9 = arith.constant 0 : index
    %c0_10 = arith.constant 0 : index
    %11 = vector.load %arg5[%c0_9, %c0_10] : memref<1x1024xf32, #tpu.memory_space<vmem>>, vector<1x1024xf32>
    %12 = vector.broadcast %11 : vector<1x1024xf32> to vector<8x1024xf32>
    %13 = arith.addf %10, %12 : vector<8x1024xf32>
    %cst_11 = arith.constant 0.000000e+00 : f32
    %14 = vector.broadcast %cst_11 : f32 to vector<8x1024xf32>
    %15 = arith.maximumf %13, %14 : vector<8x1024xf32>
    %16 = arith.truncf %15 : vector<8x1024xf32> to vector<8x1024xbf16>
    %c0_12 = arith.constant 0 : index
    %c0_13 = arith.constant 0 : index
    %17 = vector.load %arg6[%c0_12, %c0_13] : memref<1024x256xbf16, #tpu.memory_space<vmem>>, vector<1024x256xbf16>
    %cst_14 = arith.constant dense<0.000000e+00> : vector<8x256xf32>
    %18 = tpu.matmul %16, %17, %cst_14 {dimension_numbers = #tpu.dot_dimension_numbers<[1], [0], [0], [1], [0, 0, 1, 1], [], []>} : vector<8x1024xbf16>, vector<1024x256xbf16>, vector<8x256xf32> -> vector<8x256xf32>
    %c0_15 = arith.constant 0 : index
    %c0_16 = arith.constant 0 : index
    %19 = vector.load %arg7[%c0_15, %c0_16] : memref<1x256xf32, #tpu.memory_space<vmem>>, vector<1x256xf32>
    %20 = vector.broadcast %19 : vector<1x256xf32> to vector<8x256xf32>
    %21 = arith.addf %18, %20 : vector<8x256xf32>
    %22 = arith.negf %21 : vector<8x256xf32>
    %23 = math.exp %22 : vector<8x256xf32>
    %cst_17 = arith.constant 1.000000e+00 : f32
    %24 = vector.broadcast %cst_17 : f32 to vector<8x256xf32>
    %25 = arith.addf %24, %23 : vector<8x256xf32>
    %26 = arith.divf %24, %25 : vector<8x256xf32>
    %c0_18 = arith.constant 0 : index
    %c0_19 = arith.constant 0 : index
    %27 = vector.load %arg8[%c0_18, %c0_19] : memref<8x256xf32, #tpu.memory_space<vmem>>, vector<8x256xf32>
    tpu.vector_store %arg8[%c0_18, %c0_19], %26 {strides = array<i32>} : memref<8x256xf32, #tpu.memory_space<vmem>>, vector<8x256xf32>,
    return
  }
  func.func @transform_0(%arg0: i32) -> (i32, i32) {
    %c0_i32 = arith.constant 0 : i32
    %c0_i32_0 = arith.constant 0 : i32
    return %arg0, %c0_i32 : i32, i32
  }
  func.func @transform_1(%arg0: i32) -> (i32, i32) {
    %c0_i32 = arith.constant 0 : i32
    %c0_i32_0 = arith.constant 0 : i32
    %c0_i32_1 = arith.constant 0 : i32
    return %c0_i32, %c0_i32_0 : i32, i32
  }
  func.func @transform_2(%arg0: i32) -> (i32, i32) {
    %c0_i32 = arith.constant 0 : i32
    %c0_i32_0 = arith.constant 0 : i32
    %c0_i32_1 = arith.constant 0 : i32
    return %c0_i32, %c0_i32_0 : i32, i32
  }
  func.func @transform_3(%arg0: i32) -> (i32, i32) {
    %c0_i32 = arith.constant 0 : i32
    %c0_i32_0 = arith.constant 0 : i32
    %c0_i32_1 = arith.constant 0 : i32
    return %c0_i32, %c0_i32_0 : i32, i32
  }
  func.func @transform_4(%arg0: i32) -> (i32, i32) {
    %c0_i32 = arith.constant 0 : i32
    %c0_i32_0 = arith.constant 0 : i32
    %c0_i32_1 = arith.constant 0 : i32
    return %c0_i32, %c0_i32_0 : i32, i32
  }
  func.func @transform_5(%arg0: i32) -> (i32, i32) {
    %c0_i32 = arith.constant 0 : i32
    %c0_i32_0 = arith.constant 0 : i32
    %c0_i32_1 = arith.constant 0 : i32
    return %c0_i32, %c0_i32_0 : i32, i32
  }
  func.func @transform_6(%arg0: i32) -> (i32, i32) {
    %c0_i32 = arith.constant 0 : i32
    %c0_i32_0 = arith.constant 0 : i32
    %c0_i32_1 = arith.constant 0 : i32
    return %c0_i32, %c0_i32_0 : i32, i32
  }
  func.func @transform_7(%arg0: i32) -> (i32, i32) {
    %c0_i32 = arith.constant 0 : i32
    %c0_i32_0 = arith.constant 0 : i32
    return %arg0, %c0_i32 : i32, i32
  }
}

</mosaic_0001>

<llo_original>
// kernel: decoder_forward.1
$region0: #{decoder_forward.1}
  #allocation0 [shape = 'u32[]', space=smem, size = 0x4, offset = 0x4, fixed_abs, tag = 'smem constant byte address 0x4 - core index']
  #allocation1 [shape = 'u32[144,128]{1,0:T(1,128)}', space=vmem, size = 0x12000, scoped, tag = 'internal scratch']
  %s0 = inlined_call_operand.vmem [shape: bf16[8,128], index: 0, kind: input, shape index: {}]
  %s1 = inlined_call_operand.hbm [shape: bf16[128,512], index: 1, kind: input, shape index: {}]
  %s2 = inlined_call_operand.vmem [shape: f32[1,512], index: 2, kind: input, shape index: {}]
  %s3 = inlined_call_operand.hbm [shape: bf16[512,1024], index: 3, kind: input, shape index: {}]
  %s4 = inlined_call_operand.vmem [shape: f32[1,1024], index: 4, kind: input, shape index: {}]
  %s5 = inlined_call_operand.hbm [shape: bf16[1024,256], index: 5, kind: input, shape index: {}]
  %s6 = inlined_call_operand.hbm [shape: f32[1,256], index: 6, kind: input, shape index: {}]
  %s7 = inlined_call_operand.vmem [shape: f32[8,256], index: 7, kind: output, shape index: {}]
  %s8 = sld [smem:[#allocation0]]
  $region54: #{decoder_forward.1} parent=0
    _
  %s10 = ssub.s32 1, %s8
  %s11 = scalar_select 0, %s10, %s8
  $region1: #{decoder_forward.1} parent=0
    #allocation2 [shape = 'u8[131072]{0}', space=vmem, size = 0x20000, scoped, tag = 'input window, operand 1, single buffered']
    #allocation3 [shape = 's32[1]{0}', space=sflag, size = 0x4, scoped, tag = 'scoped memory for decoder_forward.1']
    #allocation4 [shape = 'u8[1048576]{0}', space=vmem, size = 0x100000, scoped, tag = 'input window, operand 3, single buffered']
    #allocation5 [shape = 's32[1]{0}', space=sflag, size = 0x4, scoped, tag = 'scoped memory for decoder_forward.1']
    #allocation6 [shape = 'u8[524288]{0}', space=vmem, size = 0x80000, scoped, tag = 'input window, operand 5, single buffered']
    #allocation7 [shape = 'u8[1024]{0}', space=vmem, size = 0x400, scoped, tag = 'input window, operand 6, single buffered']
    #allocation8 [shape = 's32[1]{0}', space=sflag, size = 0x4, scoped, tag = 'scoped memory for decoder_forward.1']
    %12 = vsyncpa [#allocation3], 0
    %13 = vsyncpa [#allocation5], 0
    %14 = vsyncpa [#allocation8], 0
    // Predicated region
    $region2: #{decoder_forward.1} parent=1 // pred_check
      _
    $region3: #{decoder_forward.1} parent=1 // pred_check_branch
      %16 = sbr.rel (0) target = $region5
    $region4: #{decoder_forward.1} parent=1 // pred_region
      _
    $region5: #{decoder_forward.1} parent=1 // pred_fallthru
      _
    // Predicated region
    $region6: #{decoder_forward.1} parent=1 // pred_check
      _
    $region7: #{decoder_forward.1} parent=1 // pred_check_branch
      %18 = sbr.rel (0) target = $region9
    $region8: #{decoder_forward.1} parent=1 // pred_region
      %s20 = ssub.s32 4096, 4096
      %21 = vsyncadd [#allocation3], %s20
      %s22 = sshll.u32 [#allocation2], 4
      %s23 = int_to_ptr.vmem [resolvable:$true] %s22
      %28 = dma.hbm_to_vmem [thread:$0]  %s1, 4096, %s23, [#allocation3], 256, 256, 16
    $region9: #{decoder_forward.1} parent=1 // pred_fallthru
      _
    // Predicated region
    $region10: #{decoder_forward.1} parent=1 // pred_check
      _
    $region11: #{decoder_forward.1} parent=1 // pred_check_branch
      %30 = sbr.rel (0) target = $region13
    $region12: #{decoder_forward.1} parent=1 // pred_region
      _
    $region13: #{decoder_forward.1} parent=1 // pred_fallthru
      _
    // Predicated region
    $region14: #{decoder_forward.1} parent=1 // pred_check
      _
    $region15: #{decoder_forward.1} parent=1 // pred_check_branch
      %32 = sbr.rel (0) target = $region17
    $region16: #{decoder_forward.1} parent=1 // pred_region
      %s34 = ssub.s32 32768, 32768
      %35 = vsyncadd [#allocation5], %s34
      %s36 = sshll.u32 [#allocation4], 4
      %s37 = int_to_ptr.vmem [resolvable:$true] %s36
      %42 = dma.hbm_to_vmem [thread:$0]  %s3, 32768, %s37, [#allocation5], 512, 512, 32
    $region17: #{decoder_forward.1} parent=1 // pred_fallthru
      _
    // Predicated region
    $region18: #{decoder_forward.1} parent=1 // pred_check
      _
    $region19: #{decoder_forward.1} parent=1 // pred_check_branch
      %44 = sbr.rel (0) target = $region21
    $region20: #{decoder_forward.1} parent=1 // pred_region
      _
    $region21: #{decoder_forward.1} parent=1 // pred_fallthru
      _
    // Predicated region
    $region22: #{decoder_forward.1} parent=1 // pred_check
      _
    $region23: #{decoder_forward.1} parent=1 // pred_check_branch
      %46 = sbr.rel (0) target = $region25
    $region24: #{decoder_forward.1} parent=1 // pred_region
      %s48 = ssub.s32 16384, 16384
      %49 = vsyncadd [#allocation5], %s48
      %s50 = sshll.u32 [#allocation6], 4
      %s51 = int_to_ptr.vmem [resolvable:$true] %s50
      %56 = dma.hbm_to_vmem [thread:$0]  %s5, 16384, %s51, [#allocation5], 128, 128, 8
    $region25: #{decoder_forward.1} parent=1 // pred_fallthru
      _
    // Predicated region
    $region26: #{decoder_forward.1} parent=1 // pred_check
      _
    $region27: #{decoder_forward.1} parent=1 // pred_check_branch
      %58 = sbr.rel (0) target = $region29
    $region28: #{decoder_forward.1} parent=1 // pred_region
      %s60 = ssub.s32 32, 32
      %61 = vsyncadd [#allocation8], %s60
      %s63 = sshll.u32 [#allocation7], 4
      %s64 = int_to_ptr.vmem [resolvable:$true] %s63
      %66 = dma.hbm_to_vmem [thread:$0]  %s6, 32, %s64, [#allocation8]
    $region29: #{decoder_forward.1} parent=1 // pred_fallthru
      _
    // Predicated region
    $region30: #{decoder_forward.1} parent=1 // pred_check
      _
    $region31: #{decoder_forward.1} parent=1 // pred_check_branch
      %68 = sbr.rel (0) target = $region33
    $region32: #{decoder_forward.1} parent=1 // pred_region
      %69 = dma.done [#allocation3], 4096
    $region33: #{decoder_forward.1} parent=1 // pred_fallthru
      _
    // Predicated region
    $region34: #{decoder_forward.1} parent=1 // pred_check
      _
    $region35: #{decoder_forward.1} parent=1 // pred_check_branch
      %71 = sbr.rel (0) target = $region37
    $region36: #{decoder_forward.1} parent=1 // pred_region
      %72 = dma.done [#allocation5], 32768
    $region37: #{decoder_forward.1} parent=1 // pred_fallthru
      _
    // Predicated region
    $region38: #{decoder_forward.1} parent=1 // pred_check
      _
    $region39: #{decoder_forward.1} parent=1 // pred_check_branch
      %74 = sbr.rel (0) target = $region41
    $region40: #{decoder_forward.1} parent=1 // pred_region
      %75 = dma.done [#allocation5], 16384
    $region41: #{decoder_forward.1} parent=1 // pred_fallthru
      _
    // Predicated region
    $region42: #{decoder_forward.1} parent=1 // pred_check
      _
    $region43: #{decoder_forward.1} parent=1 // pred_check_branch
      %77 = sbr.rel (0) target = $region45
    $region44: #{decoder_forward.1} parent=1 // pred_region
      %78 = dma.done [#allocation8], 32
    $region45: #{decoder_forward.1} parent=1 // pred_fallthru
      _
    %v80 = vld [vmem:[%s0] sm:$0xf]
    %v81 = vld [vmem:[#allocation2] sm:$0xff]
    %v82 = vld [vmem:[#allocation2 + $0x8] sm:$0xff]
    %v83 = vld [vmem:[#allocation2 + $0x10] sm:$0xff]
    %v84 = vld [vmem:[#allocation2 + $0x18] sm:$0xff]
    %v85 = vld [vmem:[#allocation2 + $0x20] sm:$0xff]
    %v86 = vld [vmem:[#allocation2 + $0x28] sm:$0xff]
    %v87 = vld [vmem:[#allocation2 + $0x30] sm:$0xff]
    %v88 = vld [vmem:[#allocation2 + $0x38] sm:$0xff]
    %v89 = vld [vmem:[#allocation2 + $0x40] sm:$0xff]
    %v90 = vld [vmem:[#allocation2 + $0x48] sm:$0xff]
    %v91 = vld [vmem:[#allocation2 + $0x50] sm:$0xff]
    %v92 = vld [vmem:[#allocation2 + $0x58] sm:$0xff]
    %v93 = vld [vmem:[#allocation2 + $0x60] sm:$0xff]
    %v94 = vld [vmem:[#allocation2 + $0x68] sm:$0xff]
    %v95 = vld [vmem:[#allocation2 + $0x70] sm:$0xff]
    %v96 = vld [vmem:[#allocation2 + $0x78] sm:$0xff]
    %v97 = vld [vmem:[#allocation2 + $0x80] sm:$0xff]
    %v98 = vld [vmem:[#allocation2 + $0x88] sm:$0xff]
    %v99 = vld [vmem:[#allocation2 + $0x90] sm:$0xff]
    %v100 = vld [vmem:[#allocation2 + $0x98] sm:$0xff]
    %v101 = vld [vmem:[#allocation2 + $0xa0] sm:$0xff]
    %v102 = vld [vmem:[#allocation2 + $0xa8] sm:$0xff]
    %v103 = vld [vmem:[#allocation2 + $0xb0] sm:$0xff]
    %v104 = vld [vmem:[#allocation2 + $0xb8] sm:$0xff]
    %v105 = vld [vmem:[#allocation2 + $0xc0] sm:$0xff]
    %v106 = vld [vmem:[#allocation2 + $0xc8] sm:$0xff]
    %v107 = vld [vmem:[#allocation2 + $0xd0] sm:$0xff]
    %v108 = vld [vmem:[#allocation2 + $0xd8] sm:$0xff]
    %v109 = vld [vmem:[#allocation2 + $0xe0] sm:$0xff]
    %v110 = vld [vmem:[#allocation2 + $0xe8] sm:$0xff]
    %v111 = vld [vmem:[#allocation2 + $0xf0] sm:$0xff]
    %v112 = vld [vmem:[#allocation2 + $0xf8] sm:$0xff]
    %v113 = vld [vmem:[%s2] sm:$0xf]
    %v115 = vlaneseq
    %v116 = vshrl.u32 %v115, 7
    %v117 = vsub.s32 0, %v116
    %v118 = vrot.slane %v113, %v117
    %v119 = vlaneseq
    %v120 = vshrl.u32 %v119, 7
    %v121 = vsub.s32 1, %v120
    %v122 = vrot.slane %v113, %v121
    %v123 = vlaneseq
    %v124 = vshrl.u32 %v123, 7
    %v125 = vsub.s32 2, %v124
    %v126 = vrot.slane %v113, %v125
    %v127 = vlaneseq
    %v128 = vshrl.u32 %v127, 7
    %v129 = vsub.s32 3, %v128
    %v130 = vrot.slane %v113, %v129
    %v167 = vunpack.c.l.b16 %v81
    %v168 = vunpack.c.h.b16 %v81
    %v169 = vunpack.c.l.b16 %v82
    %v170 = vunpack.c.h.b16 %v82
    %v171 = vunpack.c.l.b16 %v83
    %v172 = vunpack.c.h.b16 %v83
    %v173 = vunpack.c.l.b16 %v84
    %v174 = vunpack.c.h.b16 %v84
    %v175 = vunpack.c.l.b16 %v85
    %v176 = vunpack.c.h.b16 %v85
    %v177 = vunpack.c.l.b16 %v86
    %v178 = vunpack.c.h.b16 %v86
    %v179 = vunpack.c.l.b16 %v87
    %v180 = vunpack.c.h.b16 %v87
    %v181 = vunpack.c.l.b16 %v88
    %v182 = vunpack.c.h.b16 %v88
    %v183 = vunpack.c.l.b16 %v89
    %v184 = vunpack.c.h.b16 %v89
    %v185 = vunpack.c.l.b16 %v90
    %v186 = vunpack.c.h.b16 %v90
    %v187 = vunpack.c.l.b16 %v91
    %v188 = vunpack.c.h.b16 %v91
    %v189 = vunpack.c.l.b16 %v92
    %v190 = vunpack.c.h.b16 %v92
    %v191 = vunpack.c.l.b16 %v93
    %v192 = vunpack.c.h.b16 %v93
    %v193 = vunpack.c.l.b16 %v94
    %v194 = vunpack.c.h.b16 %v94
    %v195 = vunpack.c.l.b16 %v95
    %v196 = vunpack.c.h.b16 %v95
    %v197 = vunpack.c.l.b16 %v96
    %v198 = vunpack.c.h.b16 %v96
    %v199 = vunpack.c.l.b16 %v97
    %v200 = vunpack.c.h.b16 %v97
    %v201 = vunpack.c.l.b16 %v98
    %v202 = vunpack.c.h.b16 %v98
    %v203 = vunpack.c.l.b16 %v99
    %v204 = vunpack.c.h.b16 %v99
    %v205 = vunpack.c.l.b16 %v100
    %v206 = vunpack.c.h.b16 %v100
    %v207 = vunpack.c.l.b16 %v101
    %v208 = vunpack.c.h.b16 %v101
    %v209 = vunpack.c.l.b16 %v102
    %v210 = vunpack.c.h.b16 %v102
    %v211 = vunpack.c.l.b16 %v103
    %v212 = vunpack.c.h.b16 %v103
    %v213 = vunpack.c.l.b16 %v104
    %v214 = vunpack.c.h.b16 %v104
    %v215 = vunpack.c.l.b16 %v105
    %v216 = vunpack.c.h.b16 %v105
    %v217 = vunpack.c.l.b16 %v106
    %v218 = vunpack.c.h.b16 %v106
    %v219 = vunpack.c.l.b16 %v107
    %v220 = vunpack.c.h.b16 %v107
    %v221 = vunpack.c.l.b16 %v108
    %v222 = vunpack.c.h.b16 %v108
    %v223 = vunpack.c.l.b16 %v109
    %v224 = vunpack.c.h.b16 %v109
    %v225 = vunpack.c.l.b16 %v110
    %v226 = vunpack.c.h.b16 %v110
    %v227 = vunpack.c.l.b16 %v111
    %v228 = vunpack.c.h.b16 %v111
    %v229 = vunpack.c.l.b16 %v112
    %v230 = vunpack.c.h.b16 %v112
    %v231 = vpack.c.b16 %v171, %v167
    %v232 = vpack.c.b16 %v172, %v168
    %v233 = vpack.c.b16 %v173, %v169
    %v234 = vpack.c.b16 %v174, %v170
    %v235 = vpack.c.b16 %v179, %v175
    %v236 = vpack.c.b16 %v180, %v176
    %v237 = vpack.c.b16 %v181, %v177
    %v238 = vpack.c.b16 %v182, %v178
    %v239 = vpack.c.b16 %v187, %v183
    %v240 = vpack.c.b16 %v188, %v184
    %v241 = vpack.c.b16 %v189, %v185
    %v242 = vpack.c.b16 %v190, %v186
    %v243 = vpack.c.b16 %v195, %v191
    %v244 = vpack.c.b16 %v196, %v192
    %v245 = vpack.c.b16 %v197, %v193
    %v246 = vpack.c.b16 %v198, %v194
    %v247 = vpack.c.b16 %v203, %v199
    %v248 = vpack.c.b16 %v204, %v200
    %v249 = vpack.c.b16 %v205, %v201
    %v250 = vpack.c.b16 %v206, %v202
    %v251 = vpack.c.b16 %v211, %v207
    %v252 = vpack.c.b16 %v212, %v208
    %v253 = vpack.c.b16 %v213, %v209
    %v254 = vpack.c.b16 %v214, %v210
    %v255 = vpack.c.b16 %v219, %v215
    %v256 = vpack.c.b16 %v220, %v216
    %v257 = vpack.c.b16 %v221, %v217
    %v258 = vpack.c.b16 %v222, %v218
    %v259 = vpack.c.b16 %v227, %v223
    %v260 = vpack.c.b16 %v228, %v224
    %v261 = vpack.c.b16 %v229, %v225
    %v262 = vpack.c.b16 %v230, %v226
    %295 = vmatprep.subr.bf16.mxu0 %v232
    %296 = vmatpush1.bf16.msra.mxu0 %v231
    %297 = vmatprep.subr.bf16.mxu0 %v236
    %298 = vmatpush1.bf16.msra.mxu0 %v235
    %299 = vmatprep.subr.bf16.mxu0 %v240
    %300 = vmatpush1.bf16.msra.mxu0 %v239
    %301 = vmatprep.subr.bf16.mxu0 %v244
    %302 = vmatpush1.bf16.msra.mxu0 %v243
    %303 = vmatprep.subr.bf16.mxu0 %v248
    %304 = vmatpush1.bf16.msra.mxu0 %v247
    %305 = vmatprep.subr.bf16.mxu0 %v252
    %306 = vmatpush1.bf16.msra.mxu0 %v251
    %307 = vmatprep.subr.bf16.mxu0 %v256
    %308 = vmatpush1.bf16.msra.mxu0 %v255
    %309 = vmatprep.subr.bf16.mxu0 %v260
    %310 = vmatpush1.bf16.msra.mxu0 %v259
    %311 = vmatprep.subr.bf16.mxu0 0
    %312 = vmatpush1.bf16.msra.mxu0 0
    %313 = vmatprep.subr.bf16.mxu0 0
    %314 = vmatpush1.bf16.msra.mxu0 0
    %315 = vmatprep.subr.bf16.mxu0 0
    %316 = vmatpush1.bf16.msra.mxu0 0
    %317 = vmatprep.subr.bf16.mxu0 0
    %318 = vmatpush1.bf16.msra.mxu0 0
    %319 = vmatprep.subr.bf16.mxu0 0
    %320 = vmatpush1.bf16.msra.mxu0 0
    %321 = vmatprep.subr.bf16.mxu0 0
    %322 = vmatpush1.bf16.msra.mxu0 0
    %323 = vmatprep.subr.bf16.mxu0 0
    %324 = vmatpush1.bf16.msra.mxu0 0
    %325 = vmatprep.subr.bf16.mxu0 0
    %326 = vmatpush1.bf16.msra.mxu0 0
    %327 = vmatprep.mubr.bf16.mxu0 0
    %328 = vmatmul.mubr.bf16.gmra.mrb[0].mxu0 %v80
    %v329 = vpop.f32.mrb[0].mxu0
    %v330 = vadd.f32 %v118, %v329
    %v331 = vpop.f32.mrb[0].mxu0
    %v332 = vadd.f32 %v122, %v331
    %v333 = vpop.f32.mrb[0].mxu0
    %v334 = vpop.f32.mrb[0].mxu0
    %335 = vdwg.mxu0
    %336 = vmatprep.subr.bf16.mxu0 %v234
    %337 = vmatpush1.bf16.msra.mxu0 %v233
    %338 = vmatprep.subr.bf16.mxu0 %v238
    %339 = vmatpush1.bf16.msra.mxu0 %v237
    %340 = vmatprep.subr.bf16.mxu0 %v242
    %341 = vmatpush1.bf16.msra.mxu0 %v241
    %342 = vmatprep.subr.bf16.mxu0 %v246
    %343 = vmatpush1.bf16.msra.mxu0 %v245
    %344 = vmatprep.subr.bf16.mxu0 %v250
    %345 = vmatpush1.bf16.msra.mxu0 %v249
    %346 = vmatprep.subr.bf16.mxu0 %v254
    %347 = vmatpush1.bf16.msra.mxu0 %v253
    %348 = vmatprep.subr.bf16.mxu0 %v258
    %349 = vmatpush1.bf16.msra.mxu0 %v257
    %350 = vmatprep.subr.bf16.mxu0 %v262
    %351 = vmatpush1.bf16.msra.mxu0 %v261
    %352 = vmatprep.subr.bf16.mxu0 0
    %353 = vmatpush1.bf16.msra.mxu0 0
    %354 = vmatprep.subr.bf16.mxu0 0
    %355 = vmatpush1.bf16.msra.mxu0 0
    %356 = vmatprep.subr.bf16.mxu0 0
    %357 = vmatpush1.bf16.msra.mxu0 0
    %358 = vmatprep.subr.bf16.mxu0 0
    %359 = vmatpush1.bf16.msra.mxu0 0
    %360 = vmatprep.subr.bf16.mxu0 0
    %361 = vmatpush1.bf16.msra.mxu0 0
    %362 = vmatprep.subr.bf16.mxu0 0
    %363 = vmatpush1.bf16.msra.mxu0 0
    %364 = vmatprep.subr.bf16.mxu0 0
    %365 = vmatpush1.bf16.msra.mxu0 0
    %366 = vmatprep.subr.bf16.mxu0 0
    %367 = vmatpush1.bf16.msra.mxu0 0
    %368 = vmatprep.mubr.bf16.mxu0 0
    %369 = vmatmul.mubr.bf16.gmra.mrb[0].mxu0 %v80
    %v370 = vpop.f32.mrb[0].mxu0
    %v371 = vadd.f32 %v126, %v370
    %v372 = vpop.f32.mrb[0].mxu0
    %v373 = vadd.f32 %v130, %v372
    %v374 = vpop.f32.mrb[0].mxu0
    %v375 = vpop.f32.mrb[0].mxu0
    %376 = vdwg.mxu0
    %v377 = vmax.f32 %v330, 0.0
    %v378 = vmax.f32 %v332, 0.0
    %v379 = vmax.f32 %v371, 0.0
    %v380 = vmax.f32 %v373, 0.0
    %v381 = vpack.c.bf16 %v377, %v377
    %v382 = vpack.c.bf16 %v378, %v378
    %v383 = vpack.c.bf16 %v379, %v379
    %v384 = vpack.c.bf16 %v380, %v380
    %v385 = vld [vmem:[#allocation4] sm:$0xff]
    %v386 = vld [vmem:[#allocation4 + $0x8] sm:$0xff]
    %v387 = vld [vmem:[#allocation4 + $0x10] sm:$0xff]
    %v388 = vld [vmem:[#allocation4 + $0x18] sm:$0xff]
    %v389 = vld [vmem:[#allocation4 + $0x20] sm:$0xff]
    %v390 = vld [vmem:[#allocation4 + $0x28] sm:$0xff]
    %v391 = vld [vmem:[#allocation4 + $0x30] sm:$0xff]
    %v392 = vld [vmem:[#allocation4 + $0x38] sm:$0xff]
    %v393 = vld [vmem:[#allocation4 + $0x40] sm:$0xff]
    %v394 = vld [vmem:[#allocation4 + $0x48] sm:$0xff]
    %v395 = vld [vmem:[#allocation4 + $0x50] sm:$0xff]
    %v396 = vld [vmem:[#allocation4 + $0x58] sm:$0xff]
    %v397 = vld [vmem:[#allocation4 + $0x60] sm:$0xff]
    %v398 = vld [vmem:[#allocation4 + $0x68] sm:$0xff]
    %v399 = vld [vmem:[#allocation4 + $0x70] sm:$0xff]
    %v400 = vld [vmem:[#allocation4 + $0x78] sm:$0xff]
    %v401 = vld [vmem:[#allocation4 + $0x80] sm:$0xff]
    %v402 = vld [vmem:[#allocation4 + $0x88] sm:$0xff]
    %v403 = vld [vmem:[#allocation4 + $0x90] sm:$0xff]
    %v404 = vld [vmem:[#allocation4 + $0x98] sm:$0xff]
    %v405 = vld [vmem:[#allocation4 + $0xa0] sm:$0xff]
    %v406 = vld [vmem:[#allocation4 + $0xa8] sm:$0xff]
    %v407 = vld [vmem:[#allocation4 + $0xb0] sm:$0xff]
    %v408 = vld [vmem:[#allocation4 + $0xb8] sm:$0xff]
    %v409 = vld [vmem:[#allocation4 + $0xc0] sm:$0xff]
    %v410 = vld [vmem:[#allocation4 + $0xc8] sm:$0xff]
    %v411 = vld [vmem:[#allocation4 + $0xd0] sm:$0xff]
    %v412 = vld [vmem:[#allocation4 + $0xd8] sm:$0xff]
    %v413 = vld [vmem:[#allocation4 + $0xe0] sm:$0xff]
    %v414 = vld [vmem:[#allocation4 + $0xe8] sm:$0xff]
    %v415 = vld [vmem:[#allocation4 + $0xf0] sm:$0xff]
    %v416 = vld [vmem:[#allocation4 + $0xf8] sm:$0xff]
    %v417 = vld [vmem:[#allocation4 + $0x100] sm:$0xff]
    %v418 = vld [vmem:[#allocation4 + $0x108] sm:$0xff]
    %v419 = vld [vmem:[#allocation4 + $0x110] sm:$0xff]
    %v420 = vld [vmem:[#allocation4 + $0x118] sm:$0xff]
    %v421 = vld [vmem:[#allocation4 + $0x120] sm:$0xff]
    %v422 = vld [vmem:[#allocation4 + $0x128] sm:$0xff]
    %v423 = vld [vmem:[#allocation4 + $0x130] sm:$0xff]
    %v424 = vld [vmem:[#allocation4 + $0x138] sm:$0xff]
    %v425 = vld [vmem:[#allocation4 + $0x140] sm:$0xff]
    %v426 = vld [vmem:[#allocation4 + $0x148] sm:$0xff]
    %v427 = vld [vmem:[#allocation4 + $0x150] sm:$0xff]
    %v428 = vld [vmem:[#allocation4 + $0x158] sm:$0xff]
    %v429 = vld [vmem:[#allocation4 + $0x160] sm:$0xff]
    %v430 = vld [vmem:[#allocation4 + $0x168] sm:$0xff]
    %v431 = vld [vmem:[#allocation4 + $0x170] sm:$0xff]
    %v432 = vld [vmem:[#allocation4 + $0x178] sm:$0xff]
    %v433 = vld [vmem:[#allocation4 + $0x180] sm:$0xff]
    %v434 = vld [vmem:[#allocation4 + $0x188] sm:$0xff]
    %v435 = vld [vmem:[#allocation4 + $0x190] sm:$0xff]
    %v436 = vld [vmem:[#allocation4 + $0x198] sm:$0xff]
    %v437 = vld [vmem:[#allocation4 + $0x1a0] sm:$0xff]
    %v438 = vld [vmem:[#allocation4 + $0x1a8] sm:$0xff]
    %v439 = vld [vmem:[#allocation4 + $0x1b0] sm:$0xff]
    %v440 = vld [vmem:[#allocation4 + $0x1b8] sm:$0xff]
    %v441 = vld [vmem:[#allocation4 + $0x1c0] sm:$0xff]
    %v442 = vld [vmem:[#allocation4 + $0x1c8] sm:$0xff]
    %v443 = vld [vmem:[#allocation4 + $0x1d0] sm:$0xff]
    %v444 = vld [vmem:[#allocation4 + $0x1d8] sm:$0xff]
    %v445 = vld [vmem:[#allocation4 + $0x1e0] sm:$0xff]
    %v446 = vld [vmem:[#allocation4 + $0x1e8] sm:$0xff]
    %v447 = vld [vmem:[#allocation4 + $0x1f0] sm:$0xff]
    %v448 = vld [vmem:[#allocation4 + $0x1f8] sm:$0xff]
    %v449 = vld [vmem:[#allocation4 + $0x200] sm:$0xff]
    %v450 = vld [vmem:[#allocation4 + $0x208] sm:$0xff]
    %v451 = vld [vmem:[#allocation4 + $0x210] sm:$0xff]
    %v452 = vld [vmem:[#allocation4 + $0x218] sm:$0xff]
    %v453 = vld [vmem:[#allocation4 + $0x220] sm:$0xff]
    %v454 = vld [vmem:[#allocation4 + $0x228] sm:$0xff]
    %v455 = vld [vmem:[#allocation4 + $0x230] sm:$0xff]
    %v456 = vld [vmem:[#allocation4 + $0x238] sm:$0xff]
    %v457 = vld [vmem:[#allocation4 + $0x240] sm:$0xff]
    %v458 = vld [vmem:[#allocation4 + $0x248] sm:$0xff]
    %v459 = vld [vmem:[#allocation4 + $0x250] sm:$0xff]
    %v460 = vld [vmem:[#allocation4 + $0x258] sm:$0xff]
    %v461 = vld [vmem:[#allocation4 + $0x260] sm:$0xff]
    %v462 = vld [vmem:[#allocation4 + $0x268] sm:$0xff]
    %v463 = vld [vmem:[#allocation4 + $0x270] sm:$0xff]
    %v464 = vld [vmem:[#allocation4 + $0x278] sm:$0xff]
    %v465 = vld [vmem:[#allocation4 + $0x280] sm:$0xff]
    %v466 = vld [vmem:[#allocation4 + $0x288] sm:$0xff]
    %v467 = vld [vmem:[#allocation4 + $0x290] sm:$0xff]
    %v468 = vld [vmem:[#allocation4 + $0x298] sm:$0xff]
    %v469 = vld [vmem:[#allocation4 + $0x2a0] sm:$0xff]
    %v470 = vld [vmem:[#allocation4 + $0x2a8] sm:$0xff]
    %v471 = vld [vmem:[#allocation4 + $0x2b0] sm:$0xff]
    %v472 = vld [vmem:[#allocation4 + $0x2b8] sm:$0xff]
    %v473 = vld [vmem:[#allocation4 + $0x2c0] sm:$0xff]
    %v474 = vld [vmem:[#allocation4 + $0x2c8] sm:$0xff]
    %v475 = vld [vmem:[#allocation4 + $0x2d0] sm:$0xff]
    %v476 = vld [vmem:[#allocation4 + $0x2d8] sm:$0xff]
    %v477 = vld [vmem:[#allocation4 + $0x2e0] sm:$0xff]
    %v478 = vld [vmem:[#allocation4 + $0x2e8] sm:$0xff]
    %v479 = vld [vmem:[#allocation4 + $0x2f0] sm:$0xff]
    %v480 = vld [vmem:[#allocation4 + $0x2f8] sm:$0xff]
    %v481 = vld [vmem:[#allocation4 + $0x300] sm:$0xff]
    %v482 = vld [vmem:[#allocation4 + $0x308] sm:$0xff]
    %v483 = vld [vmem:[#allocation4 + $0x310] sm:$0xff]
    %v484 = vld [vmem:[#allocation4 + $0x318] sm:$0xff]
    %v485 = vld [vmem:[#allocation4 + $0x320] sm:$0xff]
    %v486 = vld [vmem:[#allocation4 + $0x328] sm:$0xff]
    %v487 = vld [vmem:[#allocation4 + $0x330] sm:$0xff]
    %v488 = vld [vmem:[#allocation4 + $0x338] sm:$0xff]
    %v489 = vld [vmem:[#allocation4 + $0x340] sm:$0xff]
    %v490 = vld [vmem:[#allocation4 + $0x348] sm:$0xff]
    %v491 = vld [vmem:[#allocation4 + $0x350] sm:$0xff]
    %v492 = vld [vmem:[#allocation4 + $0x358] sm:$0xff]
    %v493 = vld [vmem:[#allocation4 + $0x360] sm:$0xff]
    %v494 = vld [vmem:[#allocation4 + $0x368] sm:$0xff]
    %v495 = vld [vmem:[#allocation4 + $0x370] sm:$0xff]
    %v496 = vld [vmem:[#allocation4 + $0x378] sm:$0xff]
    %v497 = vld [vmem:[#allocation4 + $0x380] sm:$0xff]
    %v498 = vld [vmem:[#allocation4 + $0x388] sm:$0xff]
    %v499 = vld [vmem:[#allocation4 + $0x390] sm:$0xff]
    %v500 = vld [vmem:[#allocation4 + $0x398] sm:$0xff]
    %v501 = vld [vmem:[#allocation4 + $0x3a0] sm:$0xff]
    %v502 = vld [vmem:[#allocation4 + $0x3a8] sm:$0xff]
    %v503 = vld [vmem:[#allocation4 + $0x3b0] sm:$0xff]
    %v504 = vld [vmem:[#allocation4 + $0x3b8] sm:$0xff]
    %v505 = vld [vmem:[#allocation4 + $0x3c0] sm:$0xff]
    %v506 = vld [vmem:[#allocation4 + $0x3c8] sm:$0xff]
    %v507 = vld [vmem:[#allocation4 + $0x3d0] sm:$0xff]
    %v508 = vld [vmem:[#allocation4 + $0x3d8] sm:$0xff]
    %v509 = vld [vmem:[#allocation4 + $0x3e0] sm:$0xff]
    %v510 = vld [vmem:[#allocation4 + $0x3e8] sm:$0xff]
    %v511 = vld [vmem:[#allocation4 + $0x3f0] sm:$0xff]
    %v512 = vld [vmem:[#allocation4 + $0x3f8] sm:$0xff]
    %v513 = vld [vmem:[#allocation4 + $0x400] sm:$0xff]
    %v514 = vld [vmem:[#allocation4 + $0x408] sm:$0xff]
    %v515 = vld [vmem:[#allocation4 + $0x410] sm:$0xff]
    %v516 = vld [vmem:[#allocation4 + $0x418] sm:$0xff]
    %v517 = vld [vmem:[#allocation4 + $0x420] sm:$0xff]
    %v518 = vld [vmem:[#allocation4 + $0x428] sm:$0xff]
    %v519 = vld [vmem:[#allocation4 + $0x430] sm:$0xff]
    %v520 = vld [vmem:[#allocation4 + $0x438] sm:$0xff]
    %v521 = vld [vmem:[#allocation4 + $0x440] sm:$0xff]
    %v522 = vld [vmem:[#allocation4 + $0x448] sm:$0xff]
    %v523 = vld [vmem:[#allocation4 + $0x450] sm:$0xff]
    %v524 = vld [vmem:[#allocation4 + $0x458] sm:$0xff]
    %v525 = vld [vmem:[#allocation4 + $0x460] sm:$0xff]
    %v526 = vld [vmem:[#allocation4 + $0x468] sm:$0xff]
    %v527 = vld [vmem:[#allocation4 + $0x470] sm:$0xff]
    %v528 = vld [vmem:[#allocation4 + $0x478] sm:$0xff]
    %v529 = vld [vmem:[#allocation4 + $0x480] sm:$0xff]
    %v530 = vld [vmem:[#allocation4 + $0x488] sm:$0xff]
    %v531 = vld [vmem:[#allocation4 + $0x490] sm:$0xff]
    %v532 = vld [vmem:[#allocation4 + $0x498] sm:$0xff]
    %v533 = vld [vmem:[#allocation4 + $0x4a0] sm:$0xff]
    %v534 = vld [vmem:[#allocation4 + $0x4a8] sm:$0xff]
    %v535 = vld [vmem:[#allocation4 + $0x4b0] sm:$0xff]
    %v536 = vld [vmem:[#allocation4 + $0x4b8] sm:$0xff]
    %v537 = vld [vmem:[#allocation4 + $0x4c0] sm:$0xff]
    %v538 = vld [vmem:[#allocation4 + $0x4c8] sm:$0xff]
    %v539 = vld [vmem:[#allocation4 + $0x4d0] sm:$0xff]
    %v540 = vld [vmem:[#allocation4 + $0x4d8] sm:$0xff]
    %v541 = vld [vmem:[#allocation4 + $0x4e0] sm:$0xff]
    %v542 = vld [vmem:[#allocation4 + $0x4e8] sm:$0xff]
    %v543 = vld [vmem:[#allocation4 + $0x4f0] sm:$0xff]
    %v544 = vld [vmem:[#allocation4 + $0x4f8] sm:$0xff]
    %v545 = vld [vmem:[#allocation4 + $0x500] sm:$0xff]
    %v546 = vld [vmem:[#allocation4 + $0x508] sm:$0xff]
    %v547 = vld [vmem:[#allocation4 + $0x510] sm:$0xff]
    %v548 = vld [vmem:[#allocation4 + $0x518] sm:$0xff]
    %v549 = vld [vmem:[#allocation4 + $0x520] sm:$0xff]
    %v550 = vld [vmem:[#allocation4 + $0x528] sm:$0xff]
    %v551 = vld [vmem:[#allocation4 + $0x530] sm:$0xff]
    %v552 = vld [vmem:[#allocation4 + $0x538] sm:$0xff]
    %v553 = vld [vmem:[#allocation4 + $0x540] sm:$0xff]
    %v554 = vld [vmem:[#allocation4 + $0x548] sm:$0xff]
    %v555 = vld [vmem:[#allocation4 + $0x550] sm:$0xff]
    %v556 = vld [vmem:[#allocation4 + $0x558] sm:$0xff]
    %v557 = vld [vmem:[#allocation4 + $0x560] sm:$0xff]
    %v558 = vld [vmem:[#allocation4 + $0x568] sm:$0xff]
    %v559 = vld [vmem:[#allocation4 + $0x570] sm:$0xff]
    %v560 = vld [vmem:[#allocation4 + $0x578] sm:$0xff]
    %v561 = vld [vmem:[#allocation4 + $0x580] sm:$0xff]
    %v562 = vld [vmem:[#allocation4 + $0x588] sm:$0xff]
    %v563 = vld [vmem:[#allocation4 + $0x590] sm:$0xff]
    %v564 = vld [vmem:[#allocation4 + $0x598] sm:$0xff]
    %v565 = vld [vmem:[#allocation4 + $0x5a0] sm:$0xff]
    %v566 = vld [vmem:[#allocation4 + $0x5a8] sm:$0xff]
    %v567 = vld [vmem:[#allocation4 + $0x5b0] sm:$0xff]
    %v568 = vld [vmem:[#allocation4 + $0x5b8] sm:$0xff]
    %v569 = vld [vmem:[#allocation4 + $0x5c0] sm:$0xff]
    %v570 = vld [vmem:[#allocation4 + $0x5c8] sm:$0xff]
    %v571 = vld [vmem:[#allocation4 + $0x5d0] sm:$0xff]
    %v572 = vld [vmem:[#allocation4 + $0x5d8] sm:$0xff]
    %v573 = vld [vmem:[#allocation4 + $0x5e0] sm:$0xff]
    %v574 = vld [vmem:[#allocation4 + $0x5e8] sm:$0xff]
    %v575 = vld [vmem:[#allocation4 + $0x5f0] sm:$0xff]
    %v576 = vld [vmem:[#allocation4 + $0x5f8] sm:$0xff]
    %v577 = vld [vmem:[#allocation4 + $0x600] sm:$0xff]
    %v578 = vld [vmem:[#allocation4 + $0x608] sm:$0xff]
    %v579 = vld [vmem:[#allocation4 + $0x610] sm:$0xff]
    %v580 = vld [vmem:[#allocation4 + $0x618] sm:$0xff]
    %v581 = vld [vmem:[#allocation4 + $0x620] sm:$0xff]
    %v582 = vld [vmem:[#allocation4 + $0x628] sm:$0xff]
    %v583 = vld [vmem:[#allocation4 + $0x630] sm:$0xff]
    %v584 = vld [vmem:[#allocation4 + $0x638] sm:$0xff]
    %v585 = vld [vmem:[#allocation4 + $0x640] sm:$0xff]
    %v586 = vld [vmem:[#allocation4 + $0x648] sm:$0xff]
    %v587 = vld [vmem:[#allocation4 + $0x650] sm:$0xff]
    %v588 = vld [vmem:[#allocation4 + $0x658] sm:$0xff]
    %v589 = vld [vmem:[#allocation4 + $0x660] sm:$0xff]
    %v590 = vld [vmem:[#allocation4 + $0x668] sm:$0xff]
    %v591 = vld [vmem:[#allocation4 + $0x670] sm:$0xff]
    %v592 = vld [vmem:[#allocation4 + $0x678] sm:$0xff]
    %v593 = vld [vmem:[#allocation4 + $0x680] sm:$0xff]
    %v594 = vld [vmem:[#allocation4 + $0x688] sm:$0xff]
    %v595 = vld [vmem:[#allocation4 + $0x690] sm:$0xff]
    %v596 = vld [vmem:[#allocation4 + $0x698] sm:$0xff]
    %v597 = vld [vmem:[#allocation4 + $0x6a0] sm:$0xff]
    %v598 = vld [vmem:[#allocation4 + $0x6a8] sm:$0xff]
    %v599 = vld [vmem:[#allocation4 + $0x6b0] sm:$0xff]
    %v600 = vld [vmem:[#allocation4 + $0x6b8] sm:$0xff]
    %v601 = vld [vmem:[#allocation4 + $0x6c0] sm:$0xff]
    %v602 = vld [vmem:[#allocation4 + $0x6c8] sm:$0xff]
    %v603 = vld [vmem:[#allocation4 + $0x6d0] sm:$0xff]
    %v604 = vld [vmem:[#allocation4 + $0x6d8] sm:$0xff]
    %v605 = vld [vmem:[#allocation4 + $0x6e0] sm:$0xff]
    %v606 = vld [vmem:[#allocation4 + $0x6e8] sm:$0xff]
    %v607 = vld [vmem:[#allocation4 + $0x6f0] sm:$0xff]
    %v608 = vld [vmem:[#allocation4 + $0x6f8] sm:$0xff]
    %v609 = vld [vmem:[#allocation4 + $0x700] sm:$0xff]
    %v610 = vld [vmem:[#allocation4 + $0x708] sm:$0xff]
    %v611 = vld [vmem:[#allocation4 + $0x710] sm:$0xff]
    %v612 = vld [vmem:[#allocation4 + $0x718] sm:$0xff]
    %v613 = vld [vmem:[#allocation4 + $0x720] sm:$0xff]
    %v614 = vld [vmem:[#allocation4 + $0x728] sm:$0xff]
    %v615 = vld [vmem:[#allocation4 + $0x730] sm:$0xff]
    %v616 = vld [vmem:[#allocation4 + $0x738] sm:$0xff]
    %v617 = vld [vmem:[#allocation4 + $0x740] sm:$0xff]
    %v618 = vld [vmem:[#allocation4 + $0x748] sm:$0xff]
    %v619 = vld [vmem:[#allocation4 + $0x750] sm:$0xff]
    %v620 = vld [vmem:[#allocation4 + $0x758] sm:$0xff]
    %v621 = vld [vmem:[#allocation4 + $0x760] sm:$0xff]
    %v622 = vld [vmem:[#allocation4 + $0x768] sm:$0xff]
    %v623 = vld [vmem:[#allocation4 + $0x770] sm:$0xff]
    %v624 = vld [vmem:[#allocation4 + $0x778] sm:$0xff]
    %v625 = vld [vmem:[#allocation4 + $0x780] sm:$0xff]
    %v626 = vld [vmem:[#allocation4 + $0x788] sm:$0xff]
    %v627 = vld [vmem:[#allocation4 + $0x790] sm:$0xff]
    %v628 = vld [vmem:[#allocation4 + $0x798] sm:$0xff]
    %v629 = vld [vmem:[#allocation4 + $0x7a0] sm:$0xff]
    %v630 = vld [vmem:[#allocation4 + $0x7a8] sm:$0xff]
    %v631 = vld [vmem:[#allocation4 + $0x7b0] sm:$0xff]
    %v632 = vld [vmem:[#allocation4 + $0x7b8] sm:$0xff]
    %v633 = vld [vmem:[#allocation4 + $0x7c0] sm:$0xff]
    %v634 = vld [vmem:[#allocation4 + $0x7c8] sm:$0xff]
    %v635 = vld [vmem:[#allocation4 + $0x7d0] sm:$0xff]
    %v636 = vld [vmem:[#allocation4 + $0x7d8] sm:$0xff]
    %v637 = vld [vmem:[#allocation4 + $0x7e0] sm:$0xff]
    %v638 = vld [vmem:[#allocation4 + $0x7e8] sm:$0xff]
    %v639 = vld [vmem:[#allocation4 + $0x7f0] sm:$0xff]
    %v640 = vld [vmem:[#allocation4 + $0x7f8] sm:$0xff]
    %v641 = vld [vmem:[%s4] sm:$0xff]
    %v643 = vlaneseq
    %v644 = vshrl.u32 %v643, 7
    %v645 = vsub.s32 0, %v644
    %v646 = vrot.slane %v641, %v645
    %v647 = vlaneseq
    %v648 = vshrl.u32 %v647, 7
    %v649 = vsub.s32 1, %v648
    %v650 = vrot.slane %v641, %v649
    %v651 = vlaneseq
    %v652 = vshrl.u32 %v651, 7
    %v653 = vsub.s32 2, %v652
    %v654 = vrot.slane %v641, %v653
    %v655 = vlaneseq
    %v656 = vshrl.u32 %v655, 7
    %v657 = vsub.s32 3, %v656
    %v658 = vrot.slane %v641, %v657
    %v659 = vlaneseq
    %v660 = vshrl.u32 %v659, 7
    %v661 = vsub.s32 4, %v660
    %v662 = vrot.slane %v641, %v661
    %v663 = vlaneseq
    %v664 = vshrl.u32 %v663, 7
    %v665 = vsub.s32 5, %v664
    %v666 = vrot.slane %v641, %v665
    %v667 = vlaneseq
    %v668 = vshrl.u32 %v667, 7
    %v669 = vsub.s32 6, %v668
    %v670 = vrot.slane %v641, %v669
    %v671 = vlaneseq
    %v672 = vshrl.u32 %v671, 7
    %v673 = vsub.s32 7, %v672
    %v674 = vrot.slane %v641, %v673
    %v939 = vunpack.c.l.b16 %v385
    %v940 = vunpack.c.h.b16 %v385
    %v941 = vunpack.c.l.b16 %v386
    %v942 = vunpack.c.h.b16 %v386
    %v943 = vunpack.c.l.b16 %v387
    %v944 = vunpack.c.h.b16 %v387
    %v945 = vunpack.c.l.b16 %v388
    %v946 = vunpack.c.h.b16 %v388
    %v947 = vunpack.c.l.b16 %v389
    %v948 = vunpack.c.h.b16 %v389
    %v949 = vunpack.c.l.b16 %v390
    %v950 = vunpack.c.h.b16 %v390
    %v951 = vunpack.c.l.b16 %v391
    %v952 = vunpack.c.h.b16 %v391
    %v953 = vunpack.c.l.b16 %v392
    %v954 = vunpack.c.h.b16 %v392
    %v955 = vunpack.c.l.b16 %v393
    %v956 = vunpack.c.h.b16 %v393
    %v957 = vunpack.c.l.b16 %v394
    %v958 = vunpack.c.h.b16 %v394
    %v959 = vunpack.c.l.b16 %v395
    %v960 = vunpack.c.h.b16 %v395
    %v961 = vunpack.c.l.b16 %v396
    %v962 = vunpack.c.h.b16 %v396
    %v963 = vunpack.c.l.b16 %v397
    %v964 = vunpack.c.h.b16 %v397
    %v965 = vunpack.c.l.b16 %v398
    %v966 = vunpack.c.h.b16 %v398
    %v967 = vunpack.c.l.b16 %v399
    %v968 = vunpack.c.h.b16 %v399
    %v969 = vunpack.c.l.b16 %v400
    %v970 = vunpack.c.h.b16 %v400
    %v971 = vunpack.c.l.b16 %v401
    %v972 = vunpack.c.h.b16 %v401
    %v973 = vunpack.c.l.b16 %v402
    %v974 = vunpack.c.h.b16 %v402
    %v975 = vunpack.c.l.b16 %v403
    %v976 = vunpack.c.h.b16 %v403
    %v977 = vunpack.c.l.b16 %v404
    %v978 = vunpack.c.h.b16 %v404
    %v979 = vunpack.c.l.b16 %v405
    %v980 = vunpack.c.h.b16 %v405
    %v981 = vunpack.c.l.b16 %v406
    %v982 = vunpack.c.h.b16 %v406
    %v983 = vunpack.c.l.b16 %v407
    %v984 = vunpack.c.h.b16 %v407
    %v985 = vunpack.c.l.b16 %v408
    %v986 = vunpack.c.h.b16 %v408
    %v987 = vunpack.c.l.b16 %v409
    %v988 = vunpack.c.h.b16 %v409
    %v989 = vunpack.c.l.b16 %v410
    %v990 = vunpack.c.h.b16 %v410
    %v991 = vunpack.c.l.b16 %v411
    %v992 = vunpack.c.h.b16 %v411
    %v993 = vunpack.c.l.b16 %v412
    %v994 = vunpack.c.h.b16 %v412
    %v995 = vunpack.c.l.b16 %v413
    %v996 = vunpack.c.h.b16 %v413
    %v997 = vunpack.c.l.b16 %v414
    %v998 = vunpack.c.h.b16 %v414
    %v999 = vunpack.c.l.b16 %v415
    %v1000 = vunpack.c.h.b16 %v415
    %v1001 = vunpack.c.l.b16 %v416
    %v1002 = vunpack.c.h.b16 %v416
    %v1003 = vunpack.c.l.b16 %v417
    %v1004 = vunpack.c.h.b16 %v417
    %v1005 = vunpack.c.l.b16 %v418
    %v1006 = vunpack.c.h.b16 %v418
    %v1007 = vunpack.c.l.b16 %v419
    %v1008 = vunpack.c.h.b16 %v419
    %v1009 = vunpack.c.l.b16 %v420
    %v1010 = vunpack.c.h.b16 %v420
    %v1011 = vunpack.c.l.b16 %v421
    %v1012 = vunpack.c.h.b16 %v421
    %v1013 = vunpack.c.l.b16 %v422
    %v1014 = vunpack.c.h.b16 %v422
    %v1015 = vunpack.c.l.b16 %v423
    %v1016 = vunpack.c.h.b16 %v423
    %v1017 = vunpack.c.l.b16 %v424
    %v1018 = vunpack.c.h.b16 %v424
    %v1019 = vunpack.c.l.b16 %v425
    %v1020 = vunpack.c.h.b16 %v425
    %v1021 = vunpack.c.l.b16 %v426
    %v1022 = vunpack.c.h.b16 %v426
    %v1023 = vunpack.c.l.b16 %v427
    %v1024 = vunpack.c.h.b16 %v427
    %v1025 = vunpack.c.l.b16 %v428
    %v1026 = vunpack.c.h.b16 %v428
    %v1027 = vunpack.c.l.b16 %v429
    %v1028 = vunpack.c.h.b16 %v429
    %v1029 = vunpack.c.l.b16 %v430
    %v1030 = vunpack.c.h.b16 %v430
    %v1031 = vunpack.c.l.b16 %v431
    %v1032 = vunpack.c.h.b16 %v431
    %v1033 = vunpack.c.l.b16 %v432
    %v1034 = vunpack.c.h.b16 %v432
    %v1035 = vunpack.c.l.b16 %v433
    %v1036 = vunpack.c.h.b16 %v433
    %v1037 = vunpack.c.l.b16 %v434
    %v1038 = vunpack.c.h.b16 %v434
    %v1039 = vunpack.c.l.b16 %v435
    %v1040 = vunpack.c.h.b16 %v435
    %v1041 = vunpack.c.l.b16 %v436
    %v1042 = vunpack.c.h.b16 %v436
    %v1043 = vunpack.c.l.b16 %v437
    %v1044 = vunpack.c.h.b16 %v437
    %v1045 = vunpack.c.l.b16 %v438
    %v1046 = vunpack.c.h.b16 %v438
    %v1047 = vunpack.c.l.b16 %v439
    %v1048 = vunpack.c.h.b16 %v439
    %v1049 = vunpack.c.l.b16 %v440
    %v1050 = vunpack.c.h.b16 %v440
    %v1051 = vunpack.c.l.b16 %v441
    %v1052 = vunpack.c.h.b16 %v441
    %v1053 = vunpack.c.l.b16 %v442
    %v1054 = vunpack.c.h.b16 %v442
    %v1055 = vunpack.c.l.b16 %v443
    %v1056 = vunpack.c.h.b16 %v443
    %v1057 = vunpack.c.l.b16 %v444
    %v1058 = vunpack.c.h.b16 %v444
    %v1059 = vunpack.c.l.b16 %v445
    %v1060 = vunpack.c.h.b16 %v445
    %v1061 = vunpack.c.l.b16 %v446
    %v1062 = vunpack.c.h.b16 %v446
    %v1063 = vunpack.c.l.b16 %v447
    %v1064 = vunpack.c.h.b16 %v447
    %v1065 = vunpack.c.l.b16 %v448
    %v1066 = vunpack.c.h.b16 %v448
    %v1067 = vunpack.c.l.b16 %v449
    %v1068 = vunpack.c.h.b16 %v449
    %v1069 = vunpack.c.l.b16 %v450
    %v1070 = vunpack.c.h.b16 %v450
    %v1071 = vunpack.c.l.b16 %v451
    %v1072 = vunpack.c.h.b16 %v451
    %v1073 = vunpack.c.l.b16 %v452
    %v1074 = vunpack.c.h.b16 %v452
    %v1075 = vunpack.c.l.b16 %v453
    %v1076 = vunpack.c.h.b16 %v453
    %v1077 = vunpack.c.l.b16 %v454
    %v1078 = vunpack.c.h.b16 %v454
    %v1079 = vunpack.c.l.b16 %v455
    %v1080 = vunpack.c.h.b16 %v455
    %v1081 = vunpack.c.l.b16 %v456
    %v1082 = vunpack.c.h.b16 %v456
    %v1083 = vunpack.c.l.b16 %v457
    %v1084 = vunpack.c.h.b16 %v457
    %v1085 = vunpack.c.l.b16 %v458
    %v1086 = vunpack.c.h.b16 %v458
    %v1087 = vunpack.c.l.b16 %v459
    %v1088 = vunpack.c.h.b16 %v459
    %v1089 = vunpack.c.l.b16 %v460
    %v1090 = vunpack.c.h.b16 %v460
    %v1091 = vunpack.c.l.b16 %v461
    %v1092 = vunpack.c.h.b16 %v461
    %v1093 = vunpack.c.l.b16 %v462
    %v1094 = vunpack.c.h.b16 %v462
    %v1095 = vunpack.c.l.b16 %v463
    %v1096 = vunpack.c.h.b16 %v463
    %v1097 = vunpack.c.l.b16 %v464
    %v1098 = vunpack.c.h.b16 %v464
    %v1099 = vunpack.c.l.b16 %v465
    %v1100 = vunpack.c.h.b16 %v465
    %v1101 = vunpack.c.l.b16 %v466
    %v1102 = vunpack.c.h.b16 %v466
    %v1103 = vunpack.c.l.b16 %v467
    %v1104 = vunpack.c.h.b16 %v467
    %v1105 = vunpack.c.l.b16 %v468
    %v1106 = vunpack.c.h.b16 %v468
    %v1107 = vunpack.c.l.b16 %v469
    %v1108 = vunpack.c.h.b16 %v469
    %v1109 = vunpack.c.l.b16 %v470
    %v1110 = vunpack.c.h.b16 %v470
    %v1111 = vunpack.c.l.b16 %v471
    %v1112 = vunpack.c.h.b16 %v471
    %v1113 = vunpack.c.l.b16 %v472
    %v1114 = vunpack.c.h.b16 %v472
    %v1115 = vunpack.c.l.b16 %v473
    %v1116 = vunpack.c.h.b16 %v473
    %v1117 = vunpack.c.l.b16 %v474
    %v1118 = vunpack.c.h.b16 %v474
    %v1119 = vunpack.c.l.b16 %v475
    %v1120 = vunpack.c.h.b16 %v475
    %v1121 = vunpack.c.l.b16 %v476
    %v1122 = vunpack.c.h.b16 %v476
    %v1123 = vunpack.c.l.b16 %v477
    %v1124 = vunpack.c.h.b16 %v477
    %v1125 = vunpack.c.l.b16 %v478
    %v1126 = vunpack.c.h.b16 %v478
    %v1127 = vunpack.c.l.b16 %v479
    %v1128 = vunpack.c.h.b16 %v479
    %v1129 = vunpack.c.l.b16 %v480
    %v1130 = vunpack.c.h.b16 %v480
    %v1131 = vunpack.c.l.b16 %v481
    %v1132 = vunpack.c.h.b16 %v481
    %v1133 = vunpack.c.l.b16 %v482
    %v1134 = vunpack.c.h.b16 %v482
    %v1135 = vunpack.c.l.b16 %v483
    %v1136 = vunpack.c.h.b16 %v483
    %v1137 = vunpack.c.l.b16 %v484
    %v1138 = vunpack.c.h.b16 %v484
    %v1139 = vunpack.c.l.b16 %v485
    %v1140 = vunpack.c.h.b16 %v485
    %v1141 = vunpack.c.l.b16 %v486
    %v1142 = vunpack.c.h.b16 %v486
    %v1143 = vunpack.c.l.b16 %v487
    %v1144 = vunpack.c.h.b16 %v487
    %v1145 = vunpack.c.l.b16 %v488
    %v1146 = vunpack.c.h.b16 %v488
    %v1147 = vunpack.c.l.b16 %v489
    %v1148 = vunpack.c.h.b16 %v489
    %v1149 = vunpack.c.l.b16 %v490
    %v1150 = vunpack.c.h.b16 %v490
    %v1151 = vunpack.c.l.b16 %v491
    %v1152 = vunpack.c.h.b16 %v491
    %v1153 = vunpack.c.l.b16 %v492
    %v1154 = vunpack.c.h.b16 %v492
    %v1155 = vunpack.c.l.b16 %v493
    %v1156 = vunpack.c.h.b16 %v493
    %v1157 = vunpack.c.l.b16 %v494
    %v1158 = vunpack.c.h.b16 %v494
    %v1159 = vunpack.c.l.b16 %v495
    %v1160 = vunpack.c.h.b16 %v495
    %v1161 = vunpack.c.l.b16 %v496
    %v1162 = vunpack.c.h.b16 %v496
    %v1163 = vunpack.c.l.b16 %v497
    %v1164 = vunpack.c.h.b16 %v497
    %v1165 = vunpack.c.l.b16 %v498
    %v1166 = vunpack.c.h.b16 %v498
    %v1167 = vunpack.c.l.b16 %v499
    %v1168 = vunpack.c.h.b16 %v499
    %v1169 = vunpack.c.l.b16 %v500
    %v1170 = vunpack.c.h.b16 %v500
    %v1171 = vunpack.c.l.b16 %v501
    %v1172 = vunpack.c.h.b16 %v501
    %v1173 = vunpack.c.l.b16 %v502
    %v1174 = vunpack.c.h.b16 %v502
    %v1175 = vunpack.c.l.b16 %v503
    %v1176 = vunpack.c.h.b16 %v503
    %v1177 = vunpack.c.l.b16 %v504
    %v1178 = vunpack.c.h.b16 %v504
    %v1179 = vunpack.c.l.b16 %v505
    %v1180 = vunpack.c.h.b16 %v505
    %v1181 = vunpack.c.l.b16 %v506
    %v1182 = vunpack.c.h.b16 %v506
    %v1183 = vunpack.c.l.b16 %v507
    %v1184 = vunpack.c.h.b16 %v507
    %v1185 = vunpack.c.l.b16 %v508
    %v1186 = vunpack.c.h.b16 %v508
    %v1187 = vunpack.c.l.b16 %v509
    %v1188 = vunpack.c.h.b16 %v509
    %v1189 = vunpack.c.l.b16 %v510
    %v1190 = vunpack.c.h.b16 %v510
    %v1191 = vunpack.c.l.b16 %v511
    %v1192 = vunpack.c.h.b16 %v511
    %v1193 = vunpack.c.l.b16 %v512
    %v1194 = vunpack.c.h.b16 %v512
    %v1195 = vunpack.c.l.b16 %v513
    %v1196 = vunpack.c.h.b16 %v513
    %v1197 = vunpack.c.l.b16 %v514
    %v1198 = vunpack.c.h.b16 %v514
    %v1199 = vunpack.c.l.b16 %v515
    %v1200 = vunpack.c.h.b16 %v515
    %v1201 = vunpack.c.l.b16 %v516
    %v1202 = vunpack.c.h.b16 %v516
    %v1203 = vunpack.c.l.b16 %v517
    %v1204 = vunpack.c.h.b16 %v517
    %v1205 = vunpack.c.l.b16 %v518
    %v1206 = vunpack.c.h.b16 %v518
    %v1207 = vunpack.c.l.b16 %v519
    %v1208 = vunpack.c.h.b16 %v519
    %v1209 = vunpack.c.l.b16 %v520
    %v1210 = vunpack.c.h.b16 %v520
    %v1211 = vunpack.c.l.b16 %v521
    %v1212 = vunpack.c.h.b16 %v521
    %v1213 = vunpack.c.l.b16 %v522
    %v1214 = vunpack.c.h.b16 %v522
    %v1215 = vunpack.c.l.b16 %v523
    %v1216 = vunpack.c.h.b16 %v523
    %v1217 = vunpack.c.l.b16 %v524
    %v1218 = vunpack.c.h.b16 %v524
    %v1219 = vunpack.c.l.b16 %v525
    %v1220 = vunpack.c.h.b16 %v525
    %v1221 = vunpack.c.l.b16 %v526
    %v1222 = vunpack.c.h.b16 %v526
    %v1223 = vunpack.c.l.b16 %v527
    %v1224 = vunpack.c.h.b16 %v527
    %v1225 = vunpack.c.l.b16 %v528
    %v1226 = vunpack.c.h.b16 %v528
    %v1227 = vunpack.c.l.b16 %v529
    %v1228 = vunpack.c.h.b16 %v529
    %v1229 = vunpack.c.l.b16 %v530
    %v1230 = vunpack.c.h.b16 %v530
    %v1231 = vunpack.c.l.b16 %v531
    %v1232 = vunpack.c.h.b16 %v531
    %v1233 = vunpack.c.l.b16 %v532
    %v1234 = vunpack.c.h.b16 %v532
    %v1235 = vunpack.c.l.b16 %v533
    %v1236 = vunpack.c.h.b16 %v533
    %v1237 = vunpack.c.l.b16 %v534
    %v1238 = vunpack.c.h.b16 %v534
    %v1239 = vunpack.c.l.b16 %v535
    %v1240 = vunpack.c.h.b16 %v535
    %v1241 = vunpack.c.l.b16 %v536
    %v1242 = vunpack.c.h.b16 %v536
    %v1243 = vunpack.c.l.b16 %v537
    %v1244 = vunpack.c.h.b16 %v537
    %v1245 = vunpack.c.l.b16 %v538
    %v1246 = vunpack.c.h.b16 %v538
    %v1247 = vunpack.c.l.b16 %v539
    %v1248 = vunpack.c.h.b16 %v539
    %v1249 = vunpack.c.l.b16 %v540
    %v1250 = vunpack.c.h.b16 %v540
    %v1251 = vunpack.c.l.b16 %v541
    %v1252 = vunpack.c.h.b16 %v541
    %v1253 = vunpack.c.l.b16 %v542
    %v1254 = vunpack.c.h.b16 %v542
    %v1255 = vunpack.c.l.b16 %v543
    %v1256 = vunpack.c.h.b16 %v543
    %v1257 = vunpack.c.l.b16 %v544
    %v1258 = vunpack.c.h.b16 %v544
    %v1259 = vunpack.c.l.b16 %v545
    %v1260 = vunpack.c.h.b16 %v545
    %v1261 = vunpack.c.l.b16 %v546
    %v1262 = vunpack.c.h.b16 %v546
    %v1263 = vunpack.c.l.b16 %v547
    %v1264 = vunpack.c.h.b16 %v547
    %v1265 = vunpack.c.l.b16 %v548
    %v1266 = vunpack.c.h.b16 %v548
    %v1267 = vunpack.c.l.b16 %v549
    %v1268 = vunpack.c.h.b16 %v549
    %v1269 = vunpack.c.l.b16 %v550
    %v1270 = vunpack.c.h.b16 %v550
    %v1271 = vunpack.c.l.b16 %v551
    %v1272 = vunpack.c.h.b16 %v551
    %v1273 = vunpack.c.l.b16 %v552
    %v1274 = vunpack.c.h.b16 %v552
    %v1275 = vunpack.c.l.b16 %v553
    %v1276 = vunpack.c.h.b16 %v553
    %v1277 = vunpack.c.l.b16 %v554
    %v1278 = vunpack.c.h.b16 %v554
    %v1279 = vunpack.c.l.b16 %v555
    %v1280 = vunpack.c.h.b16 %v555
    %v1281 = vunpack.c.l.b16 %v556
    %v1282 = vunpack.c.h.b16 %v556
    %v1283 = vunpack.c.l.b16 %v557
    %v1284 = vunpack.c.h.b16 %v557
    %v1285 = vunpack.c.l.b16 %v558
    %v1286 = vunpack.c.h.b16 %v558
    %v1287 = vunpack.c.l.b16 %v559
    %v1288 = vunpack.c.h.b16 %v559
    %v1289 = vunpack.c.l.b16 %v560
    %v1290 = vunpack.c.h.b16 %v560
    %v1291 = vunpack.c.l.b16 %v561
    %v1292 = vunpack.c.h.b16 %v561
    %v1293 = vunpack.c.l.b16 %v562
    %v1294 = vunpack.c.h.b16 %v562
    %v1295 = vunpack.c.l.b16 %v563
    %v1296 = vunpack.c.h.b16 %v563
    %v1297 = vunpack.c.l.b16 %v564
    %v1298 = vunpack.c.h.b16 %v564
    %v1299 = vunpack.c.l.b16 %v565
    %v1300 = vunpack.c.h.b16 %v565
    %v1301 = vunpack.c.l.b16 %v566
    %v1302 = vunpack.c.h.b16 %v566
    %v1303 = vunpack.c.l.b16 %v567
    %v1304 = vunpack.c.h.b16 %v567
    %v1305 = vunpack.c.l.b16 %v568
    %v1306 = vunpack.c.h.b16 %v568
    %v1307 = vunpack.c.l.b16 %v569
    %v1308 = vunpack.c.h.b16 %v569
    %v1309 = vunpack.c.l.b16 %v570
    %v1310 = vunpack.c.h.b16 %v570
    %v1311 = vunpack.c.l.b16 %v571
    %v1312 = vunpack.c.h.b16 %v571
    %v1313 = vunpack.c.l.b16 %v572
    %v1314 = vunpack.c.h.b16 %v572
    %v1315 = vunpack.c.l.b16 %v573
    %v1316 = vunpack.c.h.b16 %v573
    %v1317 = vunpack.c.l.b16 %v574
    %v1318 = vunpack.c.h.b16 %v574
    %v1319 = vunpack.c.l.b16 %v575
    %v1320 = vunpack.c.h.b16 %v575
    %v1321 = vunpack.c.l.b16 %v576
    %v1322 = vunpack.c.h.b16 %v576
    %v1323 = vunpack.c.l.b16 %v577
    %v1324 = vunpack.c.h.b16 %v577
    %v1325 = vunpack.c.l.b16 %v578
    %v1326 = vunpack.c.h.b16 %v578
    %v1327 = vunpack.c.l.b16 %v579
    %v1328 = vunpack.c.h.b16 %v579
    %v1329 = vunpack.c.l.b16 %v580
    %v1330 = vunpack.c.h.b16 %v580
    %v1331 = vunpack.c.l.b16 %v581
    %v1332 = vunpack.c.h.b16 %v581
    %v1333 = vunpack.c.l.b16 %v582
    %v1334 = vunpack.c.h.b16 %v582
    %v1335 = vunpack.c.l.b16 %v583
    %v1336 = vunpack.c.h.b16 %v583
    %v1337 = vunpack.c.l.b16 %v584
    %v1338 = vunpack.c.h.b16 %v584
    %v1339 = vunpack.c.l.b16 %v585
    %v1340 = vunpack.c.h.b16 %v585
    %v1341 = vunpack.c.l.b16 %v586
    %v1342 = vunpack.c.h.b16 %v586
    %v1343 = vunpack.c.l.b16 %v587
    %v1344 = vunpack.c.h.b16 %v587
    %v1345 = vunpack.c.l.b16 %v588
    %v1346 = vunpack.c.h.b16 %v588
    %v1347 = vunpack.c.l.b16 %v589
    %v1348 = vunpack.c.h.b16 %v589
    %v1349 = vunpack.c.l.b16 %v590
    %v1350 = vunpack.c.h.b16 %v590
    %v1351 = vunpack.c.l.b16 %v591
    %v1352 = vunpack.c.h.b16 %v591
    %v1353 = vunpack.c.l.b16 %v592
    %v1354 = vunpack.c.h.b16 %v592
    %v1355 = vunpack.c.l.b16 %v593
    %v1356 = vunpack.c.h.b16 %v593
    %v1357 = vunpack.c.l.b16 %v594
    %v1358 = vunpack.c.h.b16 %v594
    %v1359 = vunpack.c.l.b16 %v595
    %v1360 = vunpack.c.h.b16 %v595
    %v1361 = vunpack.c.l.b16 %v596
    %v1362 = vunpack.c.h.b16 %v596
    %v1363 = vunpack.c.l.b16 %v597
    %v1364 = vunpack.c.h.b16 %v597
    %v1365 = vunpack.c.l.b16 %v598
    %v1366 = vunpack.c.h.b16 %v598
    %v1367 = vunpack.c.l.b16 %v599
    %v1368 = vunpack.c.h.b16 %v599
    %v1369 = vunpack.c.l.b16 %v600
    %v1370 = vunpack.c.h.b16 %v600
    %v1371 = vunpack.c.l.b16 %v601
    %v1372 = vunpack.c.h.b16 %v601
    %v1373 = vunpack.c.l.b16 %v602
    %v1374 = vunpack.c.h.b16 %v602
    %v1375 = vunpack.c.l.b16 %v603
    %v1376 = vunpack.c.h.b16 %v603
    %v1377 = vunpack.c.l.b16 %v604
    %v1378 = vunpack.c.h.b16 %v604
    %v1379 = vunpack.c.l.b16 %v605
    %v1380 = vunpack.c.h.b16 %v605
    %v1381 = vunpack.c.l.b16 %v606
    %v1382 = vunpack.c.h.b16 %v606
    %v1383 = vunpack.c.l.b16 %v607
    %v1384 = vunpack.c.h.b16 %v607
    %v1385 = vunpack.c.l.b16 %v608
    %v1386 = vunpack.c.h.b16 %v608
    %v1387 = vunpack.c.l.b16 %v609
    %v1388 = vunpack.c.h.b16 %v609
    %v1389 = vunpack.c.l.b16 %v610
    %v1390 = vunpack.c.h.b16 %v610
    %v1391 = vunpack.c.l.b16 %v611
    %v1392 = vunpack.c.h.b16 %v611
    %v1393 = vunpack.c.l.b16 %v612
    %v1394 = vunpack.c.h.b16 %v612
    %v1395 = vunpack.c.l.b16 %v613
    %v1396 = vunpack.c.h.b16 %v613
    %v1397 = vunpack.c.l.b16 %v614
    %v1398 = vunpack.c.h.b16 %v614
    %v1399 = vunpack.c.l.b16 %v615
    %v1400 = vunpack.c.h.b16 %v615
    %v1401 = vunpack.c.l.b16 %v616
    %v1402 = vunpack.c.h.b16 %v616
    %v1403 = vunpack.c.l.b16 %v617
    %v1404 = vunpack.c.h.b16 %v617
    %v1405 = vunpack.c.l.b16 %v618
    %v1406 = vunpack.c.h.b16 %v618
    %v1407 = vunpack.c.l.b16 %v619
    %v1408 = vunpack.c.h.b16 %v619
    %v1409 = vunpack.c.l.b16 %v620
    %v1410 = vunpack.c.h.b16 %v620
    %v1411 = vunpack.c.l.b16 %v621
    %v1412 = vunpack.c.h.b16 %v621
    %v1413 = vunpack.c.l.b16 %v622
    %v1414 = vunpack.c.h.b16 %v622
    %v1415 = vunpack.c.l.b16 %v623
    %v1416 = vunpack.c.h.b16 %v623
    %v1417 = vunpack.c.l.b16 %v624
    %v1418 = vunpack.c.h.b16 %v624
    %v1419 = vunpack.c.l.b16 %v625
    %v1420 = vunpack.c.h.b16 %v625
    %v1421 = vunpack.c.l.b16 %v626
    %v1422 = vunpack.c.h.b16 %v626
    %v1423 = vunpack.c.l.b16 %v627
    %v1424 = vunpack.c.h.b16 %v627
    %v1425 = vunpack.c.l.b16 %v628
    %v1426 = vunpack.c.h.b16 %v628
    %v1427 = vunpack.c.l.b16 %v629
    %v1428 = vunpack.c.h.b16 %v629
    %v1429 = vunpack.c.l.b16 %v630
    %v1430 = vunpack.c.h.b16 %v630
    %v1431 = vunpack.c.l.b16 %v631
    %v1432 = vunpack.c.h.b16 %v631
    %v1433 = vunpack.c.l.b16 %v632
    %v1434 = vunpack.c.h.b16 %v632
    %v1435 = vunpack.c.l.b16 %v633
    %v1436 = vunpack.c.h.b16 %v633
    %v1437 = vunpack.c.l.b16 %v634
    %v1438 = vunpack.c.h.b16 %v634
    %v1439 = vunpack.c.l.b16 %v635
    %v1440 = vunpack.c.h.b16 %v635
    %v1441 = vunpack.c.l.b16 %v636
    %v1442 = vunpack.c.h.b16 %v636
    %v1443 = vunpack.c.l.b16 %v637
    %v1444 = vunpack.c.h.b16 %v637
    %v1445 = vunpack.c.l.b16 %v638
    %v1446 = vunpack.c.h.b16 %v638
    %v1447 = vunpack.c.l.b16 %v639
    %v1448 = vunpack.c.h.b16 %v639
    %v1449 = vunpack.c.l.b16 %v640
    %v1450 = vunpack.c.h.b16 %v640
    %v1451 = vpack.c.b16 %v947, %v939
    %v1452 = vpack.c.b16 %v948, %v940
    %v1453 = vpack.c.b16 %v949, %v941
    %v1454 = vpack.c.b16 %v950, %v942
    %v1455 = vpack.c.b16 %v951, %v943
    %v1456 = vpack.c.b16 %v952, %v944
    %v1457 = vpack.c.b16 %v953, %v945
    %v1458 = vpack.c.b16 %v954, %v946
    %v1459 = vpack.c.b16 %v963, %v955
    %v1460 = vpack.c.b16 %v964, %v956
    %v1461 = vpack.c.b16 %v965, %v957
    %v1462 = vpack.c.b16 %v966, %v958
    %v1463 = vpack.c.b16 %v967, %v959
    %v1464 = vpack.c.b16 %v968, %v960
    %v1465 = vpack.c.b16 %v969, %v961
    %v1466 = vpack.c.b16 %v970, %v962
    %v1467 = vpack.c.b16 %v979, %v971
    %v1468 = vpack.c.b16 %v980, %v972
    %v1469 = vpack.c.b16 %v981, %v973
    %v1470 = vpack.c.b16 %v982, %v974
    %v1471 = vpack.c.b16 %v983, %v975
    %v1472 = vpack.c.b16 %v984, %v976
    %v1473 = vpack.c.b16 %v985, %v977
    %v1474 = vpack.c.b16 %v986, %v978
    %v1475 = vpack.c.b16 %v995, %v987
    %v1476 = vpack.c.b16 %v996, %v988
    %v1477 = vpack.c.b16 %v997, %v989
    %v1478 = vpack.c.b16 %v998, %v990
    %v1479 = vpack.c.b16 %v999, %v991
    %v1480 = vpack.c.b16 %v1000, %v992
    %v1481 = vpack.c.b16 %v1001, %v993
    %v1482 = vpack.c.b16 %v1002, %v994
    %v1483 = vpack.c.b16 %v1011, %v1003
    %v1484 = vpack.c.b16 %v1012, %v1004
    %v1485 = vpack.c.b16 %v1013, %v1005
    %v1486 = vpack.c.b16 %v1014, %v1006
    %v1487 = vpack.c.b16 %v1015, %v1007
    %v1488 = vpack.c.b16 %v1016, %v1008
    %v1489 = vpack.c.b16 %v1017, %v1009
    %v1490 = vpack.c.b16 %v1018, %v1010
    %v1491 = vpack.c.b16 %v1027, %v1019
    %v1492 = vpack.c.b16 %v1028, %v1020
    %v1493 = vpack.c.b16 %v1029, %v1021
    %v1494 = vpack.c.b16 %v1030, %v1022
    %v1495 = vpack.c.b16 %v1031, %v1023
    %v1496 = vpack.c.b16 %v1032, %v1024
    %v1497 = vpack.c.b16 %v1033, %v1025
    %v1498 = vpack.c.b16 %v1034, %v1026
    %v1499 = vpack.c.b16 %v1043, %v1035
    %v1500 = vpack.c.b16 %v1044, %v1036
    %v1501 = vpack.c.b16 %v1045, %v1037
    %v1502 = vpack.c.b16 %v1046, %v1038
    %v1503 = vpack.c.b16 %v1047, %v1039
    %v1504 = vpack.c.b16 %v1048, %v1040
    %v1505 = vpack.c.b16 %v1049, %v1041
    %v1506 = vpack.c.b16 %v1050, %v1042
    %v1507 = vpack.c.b16 %v1059, %v1051
    %v1508 = vpack.c.b16 %v1060, %v1052
    %v1509 = vpack.c.b16 %v1061, %v1053
    %v1510 = vpack.c.b16 %v1062, %v1054
    %v1511 = vpack.c.b16 %v1063, %v1055
    %v1512 = vpack.c.b16 %v1064, %v1056
    %v1513 = vpack.c.b16 %v1065, %v1057
    %v1514 = vpack.c.b16 %v1066, %v1058
    %v1515 = vpack.c.b16 %v1075, %v1067
    %v1516 = vpack.c.b16 %v1076, %v1068
    %v1517 = vpack.c.b16 %v1077, %v1069
    %v1518 = vpack.c.b16 %v1078, %v1070
    %v1519 = vpack.c.b16 %v1079, %v1071
    %v1520 = vpack.c.b16 %v1080, %v1072
    %v1521 = vpack.c.b16 %v1081, %v1073
    %v1522 = vpack.c.b16 %v1082, %v1074
    %v1523 = vpack.c.b16 %v1091, %v1083
    %v1524 = vpack.c.b16 %v1092, %v1084
    %v1525 = vpack.c.b16 %v1093, %v1085
    %v1526 = vpack.c.b16 %v1094, %v1086
    %v1527 = vpack.c.b16 %v1095, %v1087
    %v1528 = vpack.c.b16 %v1096, %v1088
    %v1529 = vpack.c.b16 %v1097, %v1089
    %v1530 = vpack.c.b16 %v1098, %v1090
    %v1531 = vpack.c.b16 %v1107, %v1099
    %v1532 = vpack.c.b16 %v1108, %v1100
    %v1533 = vpack.c.b16 %v1109, %v1101
    %v1534 = vpack.c.b16 %v1110, %v1102
    %v1535 = vpack.c.b16 %v1111, %v1103
    %v1536 = vpack.c.b16 %v1112, %v1104
    %v1537 = vpack.c.b16 %v1113, %v1105
    %v1538 = vpack.c.b16 %v1114, %v1106
    %v1539 = vpack.c.b16 %v1123, %v1115
    %v1540 = vpack.c.b16 %v1124, %v1116
    %v1541 = vpack.c.b16 %v1125, %v1117
    %v1542 = vpack.c.b16 %v1126, %v1118
    %v1543 = vpack.c.b16 %v1127, %v1119
    %v1544 = vpack.c.b16 %v1128, %v1120
    %v1545 = vpack.c.b16 %v1129, %v1121
    %v1546 = vpack.c.b16 %v1130, %v1122
    %v1547 = vpack.c.b16 %v1139, %v1131
    %v1548 = vpack.c.b16 %v1140, %v1132
    %v1549 = vpack.c.b16 %v1141, %v1133
    %v1550 = vpack.c.b16 %v1142, %v1134
    %v1551 = vpack.c.b16 %v1143, %v1135
    %v1552 = vpack.c.b16 %v1144, %v1136
    %v1553 = vpack.c.b16 %v1145, %v1137
    %v1554 = vpack.c.b16 %v1146, %v1138
    %v1555 = vpack.c.b16 %v1155, %v1147
    %v1556 = vpack.c.b16 %v1156, %v1148
    %v1557 = vpack.c.b16 %v1157, %v1149
    %v1558 = vpack.c.b16 %v1158, %v1150
    %v1559 = vpack.c.b16 %v1159, %v1151
    %v1560 = vpack.c.b16 %v1160, %v1152
    %v1561 = vpack.c.b16 %v1161, %v1153
    %v1562 = vpack.c.b16 %v1162, %v1154
    %v1563 = vpack.c.b16 %v1171, %v1163
    %v1564 = vpack.c.b16 %v1172, %v1164
    %v1565 = vpack.c.b16 %v1173, %v1165
    %v1566 = vpack.c.b16 %v1174, %v1166
    %v1567 = vpack.c.b16 %v1175, %v1167
    %v1568 = vpack.c.b16 %v1176, %v1168
    %v1569 = vpack.c.b16 %v1177, %v1169
    %v1570 = vpack.c.b16 %v1178, %v1170
    %v1571 = vpack.c.b16 %v1187, %v1179
    %v1572 = vpack.c.b16 %v1188, %v1180
    %v1573 = vpack.c.b16 %v1189, %v1181
    %v1574 = vpack.c.b16 %v1190, %v1182
    %v1575 = vpack.c.b16 %v1191, %v1183
    %v1576 = vpack.c.b16 %v1192, %v1184
    %v1577 = vpack.c.b16 %v1193, %v1185
    %v1578 = vpack.c.b16 %v1194, %v1186
    %v1579 = vpack.c.b16 %v1203, %v1195
    %v1580 = vpack.c.b16 %v1204, %v1196
    %v1581 = vpack.c.b16 %v1205, %v1197
    %v1582 = vpack.c.b16 %v1206, %v1198
    %v1583 = vpack.c.b16 %v1207, %v1199
    %v1584 = vpack.c.b16 %v1208, %v1200
    %v1585 = vpack.c.b16 %v1209, %v1201
    %v1586 = vpack.c.b16 %v1210, %v1202
    %v1587 = vpack.c.b16 %v1219, %v1211
    %v1588 = vpack.c.b16 %v1220, %v1212
    %v1589 = vpack.c.b16 %v1221, %v1213
    %v1590 = vpack.c.b16 %v1222, %v1214
    %v1591 = vpack.c.b16 %v1223, %v1215
    %v1592 = vpack.c.b16 %v1224, %v1216
    %v1593 = vpack.c.b16 %v1225, %v1217
    %v1594 = vpack.c.b16 %v1226, %v1218
    %v1595 = vpack.c.b16 %v1235, %v1227
    %v1596 = vpack.c.b16 %v1236, %v1228
    %v1597 = vpack.c.b16 %v1237, %v1229
    %v1598 = vpack.c.b16 %v1238, %v1230
    %v1599 = vpack.c.b16 %v1239, %v1231
    %v1600 = vpack.c.b16 %v1240, %v1232
    %v1601 = vpack.c.b16 %v1241, %v1233
    %v1602 = vpack.c.b16 %v1242, %v1234
    %v1603 = vpack.c.b16 %v1251, %v1243
    %v1604 = vpack.c.b16 %v1252, %v1244
    %v1605 = vpack.c.b16 %v1253, %v1245
    %v1606 = vpack.c.b16 %v1254, %v1246
    %v1607 = vpack.c.b16 %v1255, %v1247
    %v1608 = vpack.c.b16 %v1256, %v1248
    %v1609 = vpack.c.b16 %v1257, %v1249
    %v1610 = vpack.c.b16 %v1258, %v1250
    %v1611 = vpack.c.b16 %v1267, %v1259
    %v1612 = vpack.c.b16 %v1268, %v1260
    %v1613 = vpack.c.b16 %v1269, %v1261
    %v1614 = vpack.c.b16 %v1270, %v1262
    %v1615 = vpack.c.b16 %v1271, %v1263
    %v1616 = vpack.c.b16 %v1272, %v1264
    %v1617 = vpack.c.b16 %v1273, %v1265
    %v1618 = vpack.c.b16 %v1274, %v1266
    %v1619 = vpack.c.b16 %v1283, %v1275
    %v1620 = vpack.c.b16 %v1284, %v1276
    %v1621 = vpack.c.b16 %v1285, %v1277
    %v1622 = vpack.c.b16 %v1286, %v1278
    %v1623 = vpack.c.b16 %v1287, %v1279
    %v1624 = vpack.c.b16 %v1288, %v1280
    %v1625 = vpack.c.b16 %v1289, %v1281
    %v1626 = vpack.c.b16 %v1290, %v1282
    %v1627 = vpack.c.b16 %v1299, %v1291
    %v1628 = vpack.c.b16 %v1300, %v1292
    %v1629 = vpack.c.b16 %v1301, %v1293
    %v1630 = vpack.c.b16 %v1302, %v1294
    %v1631 = vpack.c.b16 %v1303, %v1295
    %v1632 = vpack.c.b16 %v1304, %v1296
    %v1633 = vpack.c.b16 %v1305, %v1297
    %v1634 = vpack.c.b16 %v1306, %v1298
    %v1635 = vpack.c.b16 %v1315, %v1307
    %v1636 = vpack.c.b16 %v1316, %v1308
    %v1637 = vpack.c.b16 %v1317, %v1309
    %v1638 = vpack.c.b16 %v1318, %v1310
    %v1639 = vpack.c.b16 %v1319, %v1311
    %v1640 = vpack.c.b16 %v1320, %v1312
    %v1641 = vpack.c.b16 %v1321, %v1313
    %v1642 = vpack.c.b16 %v1322, %v1314
    %v1643 = vpack.c.b16 %v1331, %v1323
    %v1644 = vpack.c.b16 %v1332, %v1324
    %v1645 = vpack.c.b16 %v1333, %v1325
    %v1646 = vpack.c.b16 %v1334, %v1326
    %v1647 = vpack.c.b16 %v1335, %v1327
    %v1648 = vpack.c.b16 %v1336, %v1328
    %v1649 = vpack.c.b16 %v1337, %v1329
    %v1650 = vpack.c.b16 %v1338, %v1330
    %v1651 = vpack.c.b16 %v1347, %v1339
    %v1652 = vpack.c.b16 %v1348, %v1340
    %v1653 = vpack.c.b16 %v1349, %v1341
    %v1654 = vpack.c.b16 %v1350, %v1342
    %v1655 = vpack.c.b16 %v1351, %v1343
    %v1656 = vpack.c.b16 %v1352, %v1344
    %v1657 = vpack.c.b16 %v1353, %v1345
    %v1658 = vpack.c.b16 %v1354, %v1346
    %v1659 = vpack.c.b16 %v1363, %v1355
    %v1660 = vpack.c.b16 %v1364, %v1356
    %v1661 = vpack.c.b16 %v1365, %v1357
    %v1662 = vpack.c.b16 %v1366, %v1358
    %v1663 = vpack.c.b16 %v1367, %v1359
    %v1664 = vpack.c.b16 %v1368, %v1360
    %v1665 = vpack.c.b16 %v1369, %v1361
    %v1666 = vpack.c.b16 %v1370, %v1362
    %v1667 = vpack.c.b16 %v1379, %v1371
    %v1668 = vpack.c.b16 %v1380, %v1372
    %v1669 = vpack.c.b16 %v1381, %v1373
    %v1670 = vpack.c.b16 %v1382, %v1374
    %v1671 = vpack.c.b16 %v1383, %v1375
    %v1672 = vpack.c.b16 %v1384, %v1376
    %v1673 = vpack.c.b16 %v1385, %v1377
    %v1674 = vpack.c.b16 %v1386, %v1378
    %v1675 = vpack.c.b16 %v1395, %v1387
    %v1676 = vpack.c.b16 %v1396, %v1388
    %v1677 = vpack.c.b16 %v1397, %v1389
    %v1678 = vpack.c.b16 %v1398, %v1390
    %v1679 = vpack.c.b16 %v1399, %v1391
    %v1680 = vpack.c.b16 %v1400, %v1392
    %v1681 = vpack.c.b16 %v1401, %v1393
    %v1682 = vpack.c.b16 %v1402, %v1394
    %v1683 = vpack.c.b16 %v1411, %v1403
    %v1684 = vpack.c.b16 %v1412, %v1404
    %v1685 = vpack.c.b16 %v1413, %v1405
    %v1686 = vpack.c.b16 %v1414, %v1406
    %v1687 = vpack.c.b16 %v1415, %v1407
    %v1688 = vpack.c.b16 %v1416, %v1408
    %v1689 = vpack.c.b16 %v1417, %v1409
    %v1690 = vpack.c.b16 %v1418, %v1410
    %v1691 = vpack.c.b16 %v1427, %v1419
    %v1692 = vpack.c.b16 %v1428, %v1420
    %v1693 = vpack.c.b16 %v1429, %v1421
    %v1694 = vpack.c.b16 %v1430, %v1422
    %v1695 = vpack.c.b16 %v1431, %v1423
    %v1696 = vpack.c.b16 %v1432, %v1424
    %v1697 = vpack.c.b16 %v1433, %v1425
    %v1698 = vpack.c.b16 %v1434, %v1426
    %v1699 = vpack.c.b16 %v1443, %v1435
    %v1700 = vpack.c.b16 %v1444, %v1436
    %v1701 = vpack.c.b16 %v1445, %v1437
    %v1702 = vpack.c.b16 %v1446, %v1438
    %v1703 = vpack.c.b16 %v1447, %v1439
    %v1704 = vpack.c.b16 %v1448, %v1440
    %v1705 = vpack.c.b16 %v1449, %v1441
    %v1706 = vpack.c.b16 %v1450, %v1442
    %1963 = vmatprep.subr.bf16.mxu0 %v1452
    %1964 = vmatpush1.bf16.msra.mxu0 %v1451
    %1965 = vmatprep.subr.bf16.mxu0 %v1460
    %1966 = vmatpush1.bf16.msra.mxu0 %v1459
    %1967 = vmatprep.subr.bf16.mxu0 %v1468
    %1968 = vmatpush1.bf16.msra.mxu0 %v1467
    %1969 = vmatprep.subr.bf16.mxu0 %v1476
    %1970 = vmatpush1.bf16.msra.mxu0 %v1475
    %1971 = vmatprep.subr.bf16.mxu0 %v1484
    %1972 = vmatpush1.bf16.msra.mxu0 %v1483
    %1973 = vmatprep.subr.bf16.mxu0 %v1492
    %1974 = vmatpush1.bf16.msra.mxu0 %v1491
    %1975 = vmatprep.subr.bf16.mxu0 %v1500
    %1976 = vmatpush1.bf16.msra.mxu0 %v1499
    %1977 = vmatprep.subr.bf16.mxu0 %v1508
    %1978 = vmatpush1.bf16.msra.mxu0 %v1507
    %1979 = vmatprep.subr.bf16.mxu0 %v1516
    %1980 = vmatpush1.bf16.msra.mxu0 %v1515
    %1981 = vmatprep.subr.bf16.mxu0 %v1524
    %1982 = vmatpush1.bf16.msra.mxu0 %v1523
    %1983 = vmatprep.subr.bf16.mxu0 %v1532
    %1984 = vmatpush1.bf16.msra.mxu0 %v1531
    %1985 = vmatprep.subr.bf16.mxu0 %v1540
    %1986 = vmatpush1.bf16.msra.mxu0 %v1539
    %1987 = vmatprep.subr.bf16.mxu0 %v1548
    %1988 = vmatpush1.bf16.msra.mxu0 %v1547
    %1989 = vmatprep.subr.bf16.mxu0 %v1556
    %1990 = vmatpush1.bf16.msra.mxu0 %v1555
    %1991 = vmatprep.subr.bf16.mxu0 %v1564
    %1992 = vmatpush1.bf16.msra.mxu0 %v1563
    %1993 = vmatprep.subr.bf16.mxu0 %v1572
    %1994 = vmatpush1.bf16.msra.mxu0 %v1571
    %1995 = vmatprep.mubr.bf16.mxu0 %v382
    %1996 = vmatmul.mubr.bf16.gmra.mrb[0].mxu0 %v381
    %v1997 = vpop.f32.mrb[0].mxu0
    %v1998 = vadd.f32 %v646, %v1997
    %v1999 = vpop.f32.mrb[0].mxu0
    %v2000 = vadd.f32 %v650, %v1999
    %v2001 = vpop.f32.mrb[0].mxu0
    %v2002 = vpop.f32.mrb[0].mxu0
    %2003 = vdwg.mxu0
    %2004 = vmatprep.subr.bf16.mxu0 %v1580
    %2005 = vmatpush1.bf16.msra.mxu0 %v1579
    %2006 = vmatprep.subr.bf16.mxu0 %v1588
    %2007 = vmatpush1.bf16.msra.mxu0 %v1587
    %2008 = vmatprep.subr.bf16.mxu0 %v1596
    %2009 = vmatpush1.bf16.msra.mxu0 %v1595
    %2010 = vmatprep.subr.bf16.mxu0 %v1604
    %2011 = vmatpush1.bf16.msra.mxu0 %v1603
    %2012 = vmatprep.subr.bf16.mxu0 %v1612
    %2013 = vmatpush1.bf16.msra.mxu0 %v1611
    %2014 = vmatprep.subr.bf16.mxu0 %v1620
    %2015 = vmatpush1.bf16.msra.mxu0 %v1619
    %2016 = vmatprep.subr.bf16.mxu0 %v1628
    %2017 = vmatpush1.bf16.msra.mxu0 %v1627
    %2018 = vmatprep.subr.bf16.mxu0 %v1636
    %2019 = vmatpush1.bf16.msra.mxu0 %v1635
    %2020 = vmatprep.subr.bf16.mxu0 %v1644
    %2021 = vmatpush1.bf16.msra.mxu0 %v1643
    %2022 = vmatprep.subr.bf16.mxu0 %v1652
    %2023 = vmatpush1.bf16.msra.mxu0 %v1651
    %2024 = vmatprep.subr.bf16.mxu0 %v1660
    %2025 = vmatpush1.bf16.msra.mxu0 %v1659
    %2026 = vmatprep.subr.bf16.mxu0 %v1668
    %2027 = vmatpush1.bf16.msra.mxu0 %v1667
    %2028 = vmatprep.subr.bf16.mxu0 %v1676
    %2029 = vmatpush1.bf16.msra.mxu0 %v1675
    %2030 = vmatprep.subr.bf16.mxu0 %v1684
    %2031 = vmatpush1.bf16.msra.mxu0 %v1683
    %2032 = vmatprep.subr.bf16.mxu0 %v1692
    %2033 = vmatpush1.bf16.msra.mxu0 %v1691
    %2034 = vmatprep.subr.bf16.mxu0 %v1700
    %2035 = vmatpush1.bf16.msra.mxu0 %v1699
    %2036 = vmatprep.mubr.bf16.mxu0 %v384
    %2037 = vmatmul.mubr.bf16.gmra.mrb[0].mxu0 %v383
    %v2038 = vpop.f32.mrb[0].mxu0
    %v2039 = vadd.f32 %v1998, %v2038
    %v2040 = vpop.f32.mrb[0].mxu0
    %v2041 = vadd.f32 %v2000, %v2040
    %v2042 = vpop.f32.mrb[0].mxu0
    %v2043 = vpop.f32.mrb[0].mxu0
    %2044 = vdwg.mxu0
    %2045 = vmatprep.subr.bf16.mxu0 %v1454
    %2046 = vmatpush1.bf16.msra.mxu0 %v1453
    %2047 = vmatprep.subr.bf16.mxu0 %v1462
    %2048 = vmatpush1.bf16.msra.mxu0 %v1461
    %2049 = vmatprep.subr.bf16.mxu0 %v1470
    %2050 = vmatpush1.bf16.msra.mxu0 %v1469
    %2051 = vmatprep.subr.bf16.mxu0 %v1478
    %2052 = vmatpush1.bf16.msra.mxu0 %v1477
    %2053 = vmatprep.subr.bf16.mxu0 %v1486
    %2054 = vmatpush1.bf16.msra.mxu0 %v1485
    %2055 = vmatprep.subr.bf16.mxu0 %v1494
    %2056 = vmatpush1.bf16.msra.mxu0 %v1493
    %2057 = vmatprep.subr.bf16.mxu0 %v1502
    %2058 = vmatpush1.bf16.msra.mxu0 %v1501
    %2059 = vmatprep.subr.bf16.mxu0 %v1510
    %2060 = vmatpush1.bf16.msra.mxu0 %v1509
    %2061 = vmatprep.subr.bf16.mxu0 %v1518
    %2062 = vmatpush1.bf16.msra.mxu0 %v1517
    %2063 = vmatprep.subr.bf16.mxu0 %v1526
    %2064 = vmatpush1.bf16.msra.mxu0 %v1525
    %2065 = vmatprep.subr.bf16.mxu0 %v1534
    %2066 = vmatpush1.bf16.msra.mxu0 %v1533
    %2067 = vmatprep.subr.bf16.mxu0 %v1542
    %2068 = vmatpush1.bf16.msra.mxu0 %v1541
    %2069 = vmatprep.subr.bf16.mxu0 %v1550
    %2070 = vmatpush1.bf16.msra.mxu0 %v1549
    %2071 = vmatprep.subr.bf16.mxu0 %v1558
    %2072 = vmatpush1.bf16.msra.mxu0 %v1557
    %2073 = vmatprep.subr.bf16.mxu0 %v1566
    %2074 = vmatpush1.bf16.msra.mxu0 %v1565
    %2075 = vmatprep.subr.bf16.mxu0 %v1574
    %2076 = vmatpush1.bf16.msra.mxu0 %v1573
    %2077 = vmatprep.mubr.bf16.mxu0 %v382
    %2078 = vmatmul.mubr.bf16.gmra.mrb[0].mxu0 %v381
    %v2079 = vpop.f32.mrb[0].mxu0
    %v2080 = vadd.f32 %v654, %v2079
    %v2081 = vpop.f32.mrb[0].mxu0
    %v2082 = vadd.f32 %v658, %v2081
    %v2083 = vpop.f32.mrb[0].mxu0
    %v2084 = vpop.f32.mrb[0].mxu0
    %2085 = vdwg.mxu0
    %2086 = vmatprep.subr.bf16.mxu0 %v1582
    %2087 = vmatpush1.bf16.msra.mxu0 %v1581
    %2088 = vmatprep.subr.bf16.mxu0 %v1590
    %2089 = vmatpush1.bf16.msra.mxu0 %v1589
    %2090 = vmatprep.subr.bf16.mxu0 %v1598
    %2091 = vmatpush1.bf16.msra.mxu0 %v1597
    %2092 = vmatprep.subr.bf16.mxu0 %v1606
    %2093 = vmatpush1.bf16.msra.mxu0 %v1605
    %2094 = vmatprep.subr.bf16.mxu0 %v1614
    %2095 = vmatpush1.bf16.msra.mxu0 %v1613
    %2096 = vmatprep.subr.bf16.mxu0 %v1622
    %2097 = vmatpush1.bf16.msra.mxu0 %v1621
    %2098 = vmatprep.subr.bf16.mxu0 %v1630
    %2099 = vmatpush1.bf16.msra.mxu0 %v1629
    %2100 = vmatprep.subr.bf16.mxu0 %v1638
    %2101 = vmatpush1.bf16.msra.mxu0 %v1637
    %2102 = vmatprep.subr.bf16.mxu0 %v1646
    %2103 = vmatpush1.bf16.msra.mxu0 %v1645
    %2104 = vmatprep.subr.bf16.mxu0 %v1654
    %2105 = vmatpush1.bf16.msra.mxu0 %v1653
    %2106 = vmatprep.subr.bf16.mxu0 %v1662
    %2107 = vmatpush1.bf16.msra.mxu0 %v1661
    %2108 = vmatprep.subr.bf16.mxu0 %v1670
    %2109 = vmatpush1.bf16.msra.mxu0 %v1669
    %2110 = vmatprep.subr.bf16.mxu0 %v1678
    %2111 = vmatpush1.bf16.msra.mxu0 %v1677
    %2112 = vmatprep.subr.bf16.mxu0 %v1686
    %2113 = vmatpush1.bf16.msra.mxu0 %v1685
    %2114 = vmatprep.subr.bf16.mxu0 %v1694
    %2115 = vmatpush1.bf16.msra.mxu0 %v1693
    %2116 = vmatprep.subr.bf16.mxu0 %v1702
    %2117 = vmatpush1.bf16.msra.mxu0 %v1701
    %2118 = vmatprep.mubr.bf16.mxu0 %v384
    %2119 = vmatmul.mubr.bf16.gmra.mrb[0].mxu0 %v383
    %v2120 = vpop.f32.mrb[0].mxu0
    %v2121 = vadd.f32 %v2080, %v2120
    %v2122 = vpop.f32.mrb[0].mxu0
    %v2123 = vadd.f32 %v2082, %v2122
    %v2124 = vpop.f32.mrb[0].mxu0
    %v2125 = vpop.f32.mrb[0].mxu0
    %2126 = vdwg.mxu0
    %2127 = vmatprep.subr.bf16.mxu0 %v1456
    %2128 = vmatpush1.bf16.msra.mxu0 %v1455
    %2129 = vmatprep.subr.bf16.mxu0 %v1464
    %2130 = vmatpush1.bf16.msra.mxu0 %v1463
    %2131 = vmatprep.subr.bf16.mxu0 %v1472
    %2132 = vmatpush1.bf16.msra.mxu0 %v1471
    %2133 = vmatprep.subr.bf16.mxu0 %v1480
    %2134 = vmatpush1.bf16.msra.mxu0 %v1479
    %2135 = vmatprep.subr.bf16.mxu0 %v1488
    %2136 = vmatpush1.bf16.msra.mxu0 %v1487
    %2137 = vmatprep.subr.bf16.mxu0 %v1496
    %2138 = vmatpush1.bf16.msra.mxu0 %v1495
    %2139 = vmatprep.subr.bf16.mxu0 %v1504
    %2140 = vmatpush1.bf16.msra.mxu0 %v1503
    %2141 = vmatprep.subr.bf16.mxu0 %v1512
    %2142 = vmatpush1.bf16.msra.mxu0 %v1511
    %2143 = vmatprep.subr.bf16.mxu0 %v1520
    %2144 = vmatpush1.bf16.msra.mxu0 %v1519
    %2145 = vmatprep.subr.bf16.mxu0 %v1528
    %2146 = vmatpush1.bf16.msra.mxu0 %v1527
    %2147 = vmatprep.subr.bf16.mxu0 %v1536
    %2148 = vmatpush1.bf16.msra.mxu0 %v1535
    %2149 = vmatprep.subr.bf16.mxu0 %v1544
    %2150 = vmatpush1.bf16.msra.mxu0 %v1543
    %2151 = vmatprep.subr.bf16.mxu0 %v1552
    %2152 = vmatpush1.bf16.msra.mxu0 %v1551
    %2153 = vmatprep.subr.bf16.mxu0 %v1560
    %2154 = vmatpush1.bf16.msra.mxu0 %v1559
    %2155 = vmatprep.subr.bf16.mxu0 %v1568
    %2156 = vmatpush1.bf16.msra.mxu0 %v1567
    %2157 = vmatprep.subr.bf16.mxu0 %v1576
    %2158 = vmatpush1.bf16.msra.mxu0 %v1575
    %2159 = vmatprep.mubr.bf16.mxu0 %v382
    %2160 = vmatmul.mubr.bf16.gmra.mrb[0].mxu0 %v381
    %v2161 = vpop.f32.mrb[0].mxu0
    %v2162 = vadd.f32 %v662, %v2161
    %v2163 = vpop.f32.mrb[0].mxu0
    %v2164 = vadd.f32 %v666, %v2163
    %v2165 = vpop.f32.mrb[0].mxu0
    %v2166 = vpop.f32.mrb[0].mxu0
    %2167 = vdwg.mxu0
    %2168 = vmatprep.subr.bf16.mxu0 %v1584
    %2169 = vmatpush1.bf16.msra.mxu0 %v1583
    %2170 = vmatprep.subr.bf16.mxu0 %v1592
    %2171 = vmatpush1.bf16.msra.mxu0 %v1591
    %2172 = vmatprep.subr.bf16.mxu0 %v1600
    %2173 = vmatpush1.bf16.msra.mxu0 %v1599
    %2174 = vmatprep.subr.bf16.mxu0 %v1608
    %2175 = vmatpush1.bf16.msra.mxu0 %v1607
    %2176 = vmatprep.subr.bf16.mxu0 %v1616
    %2177 = vmatpush1.bf16.msra.mxu0 %v1615
    %2178 = vmatprep.subr.bf16.mxu0 %v1624
    %2179 = vmatpush1.bf16.msra.mxu0 %v1623
    %2180 = vmatprep.subr.bf16.mxu0 %v1632
    %2181 = vmatpush1.bf16.msra.mxu0 %v1631
    %2182 = vmatprep.subr.bf16.mxu0 %v1640
    %2183 = vmatpush1.bf16.msra.mxu0 %v1639
    %2184 = vmatprep.subr.bf16.mxu0 %v1648
    %2185 = vmatpush1.bf16.msra.mxu0 %v1647
    %2186 = vmatprep.subr.bf16.mxu0 %v1656
    %2187 = vmatpush1.bf16.msra.mxu0 %v1655
    %2188 = vmatprep.subr.bf16.mxu0 %v1664
    %2189 = vmatpush1.bf16.msra.mxu0 %v1663
    %2190 = vmatprep.subr.bf16.mxu0 %v1672
    %2191 = vmatpush1.bf16.msra.mxu0 %v1671
    %2192 = vmatprep.subr.bf16.mxu0 %v1680
    %2193 = vmatpush1.bf16.msra.mxu0 %v1679
    %2194 = vmatprep.subr.bf16.mxu0 %v1688
    %2195 = vmatpush1.bf16.msra.mxu0 %v1687
    %2196 = vmatprep.subr.bf16.mxu0 %v1696
    %2197 = vmatpush1.bf16.msra.mxu0 %v1695
    %2198 = vmatprep.subr.bf16.mxu0 %v1704
    %2199 = vmatpush1.bf16.msra.mxu0 %v1703
    %2200 = vmatprep.mubr.bf16.mxu0 %v384
    %2201 = vmatmul.mubr.bf16.gmra.mrb[0].mxu0 %v383
    %v2202 = vpop.f32.mrb[0].mxu0
    %v2203 = vadd.f32 %v2162, %v2202
    %v2204 = vpop.f32.mrb[0].mxu0
    %v2205 = vadd.f32 %v2164, %v2204
    %v2206 = vpop.f32.mrb[0].mxu0
    %v2207 = vpop.f32.mrb[0].mxu0
    %2208 = vdwg.mxu0
    %2209 = vmatprep.subr.bf16.mxu0 %v1458
    %2210 = vmatpush1.bf16.msra.mxu0 %v1457
    %2211 = vmatprep.subr.bf16.mxu0 %v1466
    %2212 = vmatpush1.bf16.msra.mxu0 %v1465
    %2213 = vmatprep.subr.bf16.mxu0 %v1474
    %2214 = vmatpush1.bf16.msra.mxu0 %v1473
    %2215 = vmatprep.subr.bf16.mxu0 %v1482
    %2216 = vmatpush1.bf16.msra.mxu0 %v1481
    %2217 = vmatprep.subr.bf16.mxu0 %v1490
    %2218 = vmatpush1.bf16.msra.mxu0 %v1489
    %2219 = vmatprep.subr.bf16.mxu0 %v1498
    %2220 = vmatpush1.bf16.msra.mxu0 %v1497
    %2221 = vmatprep.subr.bf16.mxu0 %v1506
    %2222 = vmatpush1.bf16.msra.mxu0 %v1505
    %2223 = vmatprep.subr.bf16.mxu0 %v1514
    %2224 = vmatpush1.bf16.msra.mxu0 %v1513
    %2225 = vmatprep.subr.bf16.mxu0 %v1522
    %2226 = vmatpush1.bf16.msra.mxu0 %v1521
    %2227 = vmatprep.subr.bf16.mxu0 %v1530
    %2228 = vmatpush1.bf16.msra.mxu0 %v1529
    %2229 = vmatprep.subr.bf16.mxu0 %v1538
    %2230 = vmatpush1.bf16.msra.mxu0 %v1537
    %2231 = vmatprep.subr.bf16.mxu0 %v1546
    %2232 = vmatpush1.bf16.msra.mxu0 %v1545
    %2233 = vmatprep.subr.bf16.mxu0 %v1554
    %2234 = vmatpush1.bf16.msra.mxu0 %v1553
    %2235 = vmatprep.subr.bf16.mxu0 %v1562
    %2236 = vmatpush1.bf16.msra.mxu0 %v1561
    %2237 = vmatprep.subr.bf16.mxu0 %v1570
    %2238 = vmatpush1.bf16.msra.mxu0 %v1569
    %2239 = vmatprep.subr.bf16.mxu0 %v1578
    %2240 = vmatpush1.bf16.msra.mxu0 %v1577
    %2241 = vmatprep.mubr.bf16.mxu0 %v382
    %2242 = vmatmul.mubr.bf16.gmra.mrb[0].mxu0 %v381
    %v2243 = vpop.f32.mrb[0].mxu0
    %v2244 = vadd.f32 %v670, %v2243
    %v2245 = vpop.f32.mrb[0].mxu0
    %v2246 = vadd.f32 %v674, %v2245
    %v2247 = vpop.f32.mrb[0].mxu0
    %v2248 = vpop.f32.mrb[0].mxu0
    %2249 = vdwg.mxu0
    %2250 = vmatprep.subr.bf16.mxu0 %v1586
    %2251 = vmatpush1.bf16.msra.mxu0 %v1585
    %2252 = vmatprep.subr.bf16.mxu0 %v1594
    %2253 = vmatpush1.bf16.msra.mxu0 %v1593
    %2254 = vmatprep.subr.bf16.mxu0 %v1602
    %2255 = vmatpush1.bf16.msra.mxu0 %v1601
    %2256 = vmatprep.subr.bf16.mxu0 %v1610
    %2257 = vmatpush1.bf16.msra.mxu0 %v1609
    %2258 = vmatprep.subr.bf16.mxu0 %v1618
    %2259 = vmatpush1.bf16.msra.mxu0 %v1617
    %2260 = vmatprep.subr.bf16.mxu0 %v1626
    %2261 = vmatpush1.bf16.msra.mxu0 %v1625
    %2262 = vmatprep.subr.bf16.mxu0 %v1634
    %2263 = vmatpush1.bf16.msra.mxu0 %v1633
    %2264 = vmatprep.subr.bf16.mxu0 %v1642
    %2265 = vmatpush1.bf16.msra.mxu0 %v1641
    %2266 = vmatprep.subr.bf16.mxu0 %v1650
    %2267 = vmatpush1.bf16.msra.mxu0 %v1649
    %2268 = vmatprep.subr.bf16.mxu0 %v1658
    %2269 = vmatpush1.bf16.msra.mxu0 %v1657
    %2270 = vmatprep.subr.bf16.mxu0 %v1666
    %2271 = vmatpush1.bf16.msra.mxu0 %v1665
    %2272 = vmatprep.subr.bf16.mxu0 %v1674
    %2273 = vmatpush1.bf16.msra.mxu0 %v1673
    %2274 = vmatprep.subr.bf16.mxu0 %v1682
    %2275 = vmatpush1.bf16.msra.mxu0 %v1681
    %2276 = vmatprep.subr.bf16.mxu0 %v1690
    %2277 = vmatpush1.bf16.msra.mxu0 %v1689
    %2278 = vmatprep.subr.bf16.mxu0 %v1698
    %2279 = vmatpush1.bf16.msra.mxu0 %v1697
    %2280 = vmatprep.subr.bf16.mxu0 %v1706
    %2281 = vmatpush1.bf16.msra.mxu0 %v1705
    %2282 = vmatprep.mubr.bf16.mxu0 %v384
    %2283 = vmatmul.mubr.bf16.gmra.mrb[0].mxu0 %v383
    %v2284 = vpop.f32.mrb[0].mxu0
    %v2285 = vadd.f32 %v2244, %v2284
    %v2286 = vpop.f32.mrb[0].mxu0
    %v2287 = vadd.f32 %v2246, %v2286
    %v2288 = vpop.f32.mrb[0].mxu0
    %v2289 = vpop.f32.mrb[0].mxu0
    %2290 = vdwg.mxu0
    %v2291 = vmax.f32 %v2039, 0.0
    %v2292 = vmax.f32 %v2041, 0.0
    %v2293 = vmax.f32 %v2121, 0.0
    %v2294 = vmax.f32 %v2123, 0.0
    %v2295 = vmax.f32 %v2203, 0.0
    %v2296 = vmax.f32 %v2205, 0.0
    %v2297 = vmax.f32 %v2285, 0.0
    %v2298 = vmax.f32 %v2287, 0.0
    %v2299 = vpack.c.bf16 %v2291, %v2291
    %v2300 = vpack.c.bf16 %v2292, %v2292
    %v2301 = vpack.c.bf16 %v2293, %v2293
    %v2302 = vpack.c.bf16 %v2294, %v2294
    %v2303 = vpack.c.bf16 %v2295, %v2295
    %v2304 = vpack.c.bf16 %v2296, %v2296
    %v2305 = vpack.c.bf16 %v2297, %v2297
    %v2306 = vpack.c.bf16 %v2298, %v2298
    %v2307 = vld [vmem:[#allocation6] sm:$0xff]
    %v2308 = vld [vmem:[#allocation6 + $0x8] sm:$0xff]
    %v2309 = vld [vmem:[#allocation6 + $0x10] sm:$0xff]
    %v2310 = vld [vmem:[#allocation6 + $0x18] sm:$0xff]
    %v2311 = vld [vmem:[#allocation6 + $0x20] sm:$0xff]
    %v2312 = vld [vmem:[#allocation6 + $0x28] sm:$0xff]
    %v2313 = vld [vmem:[#allocation6 + $0x30] sm:$0xff]
    %v2314 = vld [vmem:[#allocation6 + $0x38] sm:$0xff]
    %v2315 = vld [vmem:[#allocation6 + $0x40] sm:$0xff]
    %v2316 = vld [vmem:[#allocation6 + $0x48] sm:$0xff]
    %v2317 = vld [vmem:[#allocation6 + $0x50] sm:$0xff]
    %v2318 = vld [vmem:[#allocation6 + $0x58] sm:$0xff]
    %v2319 = vld [vmem:[#allocation6 + $0x60] sm:$0xff]
    %v2320 = vld [vmem:[#allocation6 + $0x68] sm:$0xff]
    %v2321 = vld [vmem:[#allocation6 + $0x70] sm:$0xff]
    %v2322 = vld [vmem:[#allocation6 + $0x78] sm:$0xff]
    %v2323 = vld [vmem:[#allocation6 + $0x80] sm:$0xff]
    %v2324 = vld [vmem:[#allocation6 + $0x88] sm:$0xff]
    %v2325 = vld [vmem:[#allocation6 + $0x90] sm:$0xff]
    %v2326 = vld [vmem:[#allocation6 + $0x98] sm:$0xff]
    %v2327 = vld [vmem:[#allocation6 + $0xa0] sm:$0xff]
    %v2328 = vld [vmem:[#allocation6 + $0xa8] sm:$0xff]
    %v2329 = vld [vmem:[#allocation6 + $0xb0] sm:$0xff]
    %v2330 = vld [vmem:[#allocation6 + $0xb8] sm:$0xff]
    %v2331 = vld [vmem:[#allocation6 + $0xc0] sm:$0xff]
    %v2332 = vld [vmem:[#allocation6 + $0xc8] sm:$0xff]
    %v2333 = vld [vmem:[#allocation6 + $0xd0] sm:$0xff]
    %v2334 = vld [vmem:[#allocation6 + $0xd8] sm:$0xff]
    %v2335 = vld [vmem:[#allocation6 + $0xe0] sm:$0xff]
    %v2336 = vld [vmem:[#allocation6 + $0xe8] sm:$0xff]
    %v2337 = vld [vmem:[#allocation6 + $0xf0] sm:$0xff]
    %v2338 = vld [vmem:[#allocation6 + $0xf8] sm:$0xff]
    %v2339 = vld [vmem:[#allocation6 + $0x100] sm:$0xff]
    %v2340 = vld [vmem:[#allocation6 + $0x108] sm:$0xff]
    %v2341 = vld [vmem:[#allocation6 + $0x110] sm:$0xff]
    %v2342 = vld [vmem:[#allocation6 + $0x118] sm:$0xff]
    %v2343 = vld [vmem:[#allocation6 + $0x120] sm:$0xff]
    %v2344 = vld [vmem:[#allocation6 + $0x128] sm:$0xff]
    %v2345 = vld [vmem:[#allocation6 + $0x130] sm:$0xff]
    %v2346 = vld [vmem:[#allocation6 + $0x138] sm:$0xff]
    %v2347 = vld [vmem:[#allocation6 + $0x140] sm:$0xff]
    %v2348 = vld [vmem:[#allocation6 + $0x148] sm:$0xff]
    %v2349 = vld [vmem:[#allocation6 + $0x150] sm:$0xff]
    %v2350 = vld [vmem:[#allocation6 + $0x158] sm:$0xff]
    %v2351 = vld [vmem:[#allocation6 + $0x160] sm:$0xff]
    %v2352 = vld [vmem:[#allocation6 + $0x168] sm:$0xff]
    %v2353 = vld [vmem:[#allocation6 + $0x170] sm:$0xff]
    %v2354 = vld [vmem:[#allocation6 + $0x178] sm:$0xff]
    %v2355 = vld [vmem:[#allocation6 + $0x180] sm:$0xff]
    %v2356 = vld [vmem:[#allocation6 + $0x188] sm:$0xff]
    %v2357 = vld [vmem:[#allocation6 + $0x190] sm:$0xff]
    %v2358 = vld [vmem:[#allocation6 + $0x198] sm:$0xff]
    %v2359 = vld [vmem:[#allocation6 + $0x1a0] sm:$0xff]
    %v2360 = vld [vmem:[#allocation6 + $0x1a8] sm:$0xff]
    %v2361 = vld [vmem:[#allocation6 + $0x1b0] sm:$0xff]
    %v2362 = vld [vmem:[#allocation6 + $0x1b8] sm:$0xff]
    %v2363 = vld [vmem:[#allocation6 + $0x1c0] sm:$0xff]
    %v2364 = vld [vmem:[#allocation6 + $0x1c8] sm:$0xff]
    %v2365 = vld [vmem:[#allocation6 + $0x1d0] sm:$0xff]
    %v2366 = vld [vmem:[#allocation6 + $0x1d8] sm:$0xff]
    %v2367 = vld [vmem:[#allocation6 + $0x1e0] sm:$0xff]
    %v2368 = vld [vmem:[#allocation6 + $0x1e8] sm:$0xff]
    %v2369 = vld [vmem:[#allocation6 + $0x1f0] sm:$0xff]
    %v2370 = vld [vmem:[#allocation6 + $0x1f8] sm:$0xff]
    %v2371 = vld [vmem:[#allocation6 + $0x200] sm:$0xff]
    %v2372 = vld [vmem:[#allocation6 + $0x208] sm:$0xff]
    %v2373 = vld [vmem:[#allocation6 + $0x210] sm:$0xff]
    %v2374 = vld [vmem:[#allocation6 + $0x218] sm:$0xff]
    %v2375 = vld [vmem:[#allocation6 + $0x220] sm:$0xff]
    %v2376 = vld [vmem:[#allocation6 + $0x228] sm:$0xff]
    %v2377 = vld [vmem:[#allocation6 + $0x230] sm:$0xff]
    %v2378 = vld [vmem:[#allocation6 + $0x238] sm:$0xff]
    %v2379 = vld [vmem:[#allocation6 + $0x240] sm:$0xff]
    %v2380 = vld [vmem:[#allocation6 + $0x248] sm:$0xff]
    %v2381 = vld [vmem:[#allocation6 + $0x250] sm:$0xff]
    %v2382 = vld [vmem:[#allocation6 + $0x258] sm:$0xff]
    %v2383 = vld [vmem:[#allocation6 + $0x260] sm:$0xff]
    %v2384 = vld [vmem:[#allocation6 + $0x268] sm:$0xff]
    %v2385 = vld [vmem:[#allocation6 + $0x270] sm:$0xff]
    %v2386 = vld [vmem:[#allocation6 + $0x278] sm:$0xff]
    %v2387 = vld [vmem:[#allocation6 + $0x280] sm:$0xff]
    %v2388 = vld [vmem:[#allocation6 + $0x288] sm:$0xff]
    %v2389 = vld [vmem:[#allocation6 + $0x290] sm:$0xff]
    %v2390 = vld [vmem:[#allocation6 + $0x298] sm:$0xff]
    %v2391 = vld [vmem:[#allocation6 + $0x2a0] sm:$0xff]
    %v2392 = vld [vmem:[#allocation6 + $0x2a8] sm:$0xff]
    %v2393 = vld [vmem:[#allocation6 + $0x2b0] sm:$0xff]
    %v2394 = vld [vmem:[#allocation6 + $0x2b8] sm:$0xff]
    %v2395 = vld [vmem:[#allocation6 + $0x2c0] sm:$0xff]
    %v2396 = vld [vmem:[#allocation6 + $0x2c8] sm:$0xff]
    %v2397 = vld [vmem:[#allocation6 + $0x2d0] sm:$0xff]
    %v2398 = vld [vmem:[#allocation6 + $0x2d8] sm:$0xff]
    %v2399 = vld [vmem:[#allocation6 + $0x2e0] sm:$0xff]
    %v2400 = vld [vmem:[#allocation6 + $0x2e8] sm:$0xff]
    %v2401 = vld [vmem:[#allocation6 + $0x2f0] sm:$0xff]
    %v2402 = vld [vmem:[#allocation6 + $0x2f8] sm:$0xff]
    %v2403 = vld [vmem:[#allocation6 + $0x300] sm:$0xff]
    %v2404 = vld [vmem:[#allocation6 + $0x308] sm:$0xff]
    %v2405 = vld [vmem:[#allocation6 + $0x310] sm:$0xff]
    %v2406 = vld [vmem:[#allocation6 + $0x318] sm:$0xff]
    %v2407 = vld [vmem:[#allocation6 + $0x320] sm:$0xff]
    %v2408 = vld [vmem:[#allocation6 + $0x328] sm:$0xff]
    %v2409 = vld [vmem:[#allocation6 + $0x330] sm:$0xff]
    %v2410 = vld [vmem:[#allocation6 + $0x338] sm:$0xff]
    %v2411 = vld [vmem:[#allocation6 + $0x340] sm:$0xff]
    %v2412 = vld [vmem:[#allocation6 + $0x348] sm:$0xff]
    %v2413 = vld [vmem:[#allocation6 + $0x350] sm:$0xff]
    %v2414 = vld [vmem:[#allocation6 + $0x358] sm:$0xff]
    %v2415 = vld [vmem:[#allocation6 + $0x360] sm:$0xff]
    %v2416 = vld [vmem:[#allocation6 + $0x368] sm:$0xff]
    %v2417 = vld [vmem:[#allocation6 + $0x370] sm:$0xff]
    %v2418 = vld [vmem:[#allocation6 + $0x378] sm:$0xff]
    %v2419 = vld [vmem:[#allocation6 + $0x380] sm:$0xff]
    %v2420 = vld [vmem:[#allocation6 + $0x388] sm:$0xff]
    %v2421 = vld [vmem:[#allocation6 + $0x390] sm:$0xff]
    %v2422 = vld [vmem:[#allocation6 + $0x398] sm:$0xff]
    %v2423 = vld [vmem:[#allocation6 + $0x3a0] sm:$0xff]
    %v2424 = vld [vmem:[#allocation6 + $0x3a8] sm:$0xff]
    %v2425 = vld [vmem:[#allocation6 + $0x3b0] sm:$0xff]
    %v2426 = vld [vmem:[#allocation6 + $0x3b8] sm:$0xff]
    %v2427 = vld [vmem:[#allocation6 + $0x3c0] sm:$0xff]
    %v2428 = vld [vmem:[#allocation6 + $0x3c8] sm:$0xff]
    %v2429 = vld [vmem:[#allocation6 + $0x3d0] sm:$0xff]
    %v2430 = vld [vmem:[#allocation6 + $0x3d8] sm:$0xff]
    %v2431 = vld [vmem:[#allocation6 + $0x3e0] sm:$0xff]
    %v2432 = vld [vmem:[#allocation6 + $0x3e8] sm:$0xff]
    %v2433 = vld [vmem:[#allocation6 + $0x3f0] sm:$0xff]
    %v2434 = vld [vmem:[#allocation6 + $0x3f8] sm:$0xff]
    %v2435 = vld [vmem:[#allocation7] sm:$0x3]
    %v2437 = vlaneseq
    %v2438 = vshrl.u32 %v2437, 7
    %v2439 = vsub.s32 0, %v2438
    %v2440 = vrot.slane %v2435, %v2439
    %v2441 = vlaneseq
    %v2442 = vshrl.u32 %v2441, 7
    %v2443 = vsub.s32 1, %v2442
    %v2444 = vrot.slane %v2435, %v2443
    %v2575 = vunpack.c.l.b16 %v2307
    %v2576 = vunpack.c.h.b16 %v2307
    %v2577 = vunpack.c.l.b16 %v2308
    %v2578 = vunpack.c.h.b16 %v2308
    %v2579 = vunpack.c.l.b16 %v2309
    %v2580 = vunpack.c.h.b16 %v2309
    %v2581 = vunpack.c.l.b16 %v2310
    %v2582 = vunpack.c.h.b16 %v2310
    %v2583 = vunpack.c.l.b16 %v2311
    %v2584 = vunpack.c.h.b16 %v2311
    %v2585 = vunpack.c.l.b16 %v2312
    %v2586 = vunpack.c.h.b16 %v2312
    %v2587 = vunpack.c.l.b16 %v2313
    %v2588 = vunpack.c.h.b16 %v2313
    %v2589 = vunpack.c.l.b16 %v2314
    %v2590 = vunpack.c.h.b16 %v2314
    %v2591 = vunpack.c.l.b16 %v2315
    %v2592 = vunpack.c.h.b16 %v2315
    %v2593 = vunpack.c.l.b16 %v2316
    %v2594 = vunpack.c.h.b16 %v2316
    %v2595 = vunpack.c.l.b16 %v2317
    %v2596 = vunpack.c.h.b16 %v2317
    %v2597 = vunpack.c.l.b16 %v2318
    %v2598 = vunpack.c.h.b16 %v2318
    %v2599 = vunpack.c.l.b16 %v2319
    %v2600 = vunpack.c.h.b16 %v2319
    %v2601 = vunpack.c.l.b16 %v2320
    %v2602 = vunpack.c.h.b16 %v2320
    %v2603 = vunpack.c.l.b16 %v2321
    %v2604 = vunpack.c.h.b16 %v2321
    %v2605 = vunpack.c.l.b16 %v2322
    %v2606 = vunpack.c.h.b16 %v2322
    %v2607 = vunpack.c.l.b16 %v2323
    %v2608 = vunpack.c.h.b16 %v2323
    %v2609 = vunpack.c.l.b16 %v2324
    %v2610 = vunpack.c.h.b16 %v2324
    %v2611 = vunpack.c.l.b16 %v2325
    %v2612 = vunpack.c.h.b16 %v2325
    %v2613 = vunpack.c.l.b16 %v2326
    %v2614 = vunpack.c.h.b16 %v2326
    %v2615 = vunpack.c.l.b16 %v2327
    %v2616 = vunpack.c.h.b16 %v2327
    %v2617 = vunpack.c.l.b16 %v2328
    %v2618 = vunpack.c.h.b16 %v2328
    %v2619 = vunpack.c.l.b16 %v2329
    %v2620 = vunpack.c.h.b16 %v2329
    %v2621 = vunpack.c.l.b16 %v2330
    %v2622 = vunpack.c.h.b16 %v2330
    %v2623 = vunpack.c.l.b16 %v2331
    %v2624 = vunpack.c.h.b16 %v2331
    %v2625 = vunpack.c.l.b16 %v2332
    %v2626 = vunpack.c.h.b16 %v2332
    %v2627 = vunpack.c.l.b16 %v2333
    %v2628 = vunpack.c.h.b16 %v2333
    %v2629 = vunpack.c.l.b16 %v2334
    %v2630 = vunpack.c.h.b16 %v2334
    %v2631 = vunpack.c.l.b16 %v2335
    %v2632 = vunpack.c.h.b16 %v2335
    %v2633 = vunpack.c.l.b16 %v2336
    %v2634 = vunpack.c.h.b16 %v2336
    %v2635 = vunpack.c.l.b16 %v2337
    %v2636 = vunpack.c.h.b16 %v2337
    %v2637 = vunpack.c.l.b16 %v2338
    %v2638 = vunpack.c.h.b16 %v2338
    %v2639 = vunpack.c.l.b16 %v2339
    %v2640 = vunpack.c.h.b16 %v2339
    %v2641 = vunpack.c.l.b16 %v2340
    %v2642 = vunpack.c.h.b16 %v2340
    %v2643 = vunpack.c.l.b16 %v2341
    %v2644 = vunpack.c.h.b16 %v2341
    %v2645 = vunpack.c.l.b16 %v2342
    %v2646 = vunpack.c.h.b16 %v2342
    %v2647 = vunpack.c.l.b16 %v2343
    %v2648 = vunpack.c.h.b16 %v2343
    %v2649 = vunpack.c.l.b16 %v2344
    %v2650 = vunpack.c.h.b16 %v2344
    %v2651 = vunpack.c.l.b16 %v2345
    %v2652 = vunpack.c.h.b16 %v2345
    %v2653 = vunpack.c.l.b16 %v2346
    %v2654 = vunpack.c.h.b16 %v2346
    %v2655 = vunpack.c.l.b16 %v2347
    %v2656 = vunpack.c.h.b16 %v2347
    %v2657 = vunpack.c.l.b16 %v2348
    %v2658 = vunpack.c.h.b16 %v2348
    %v2659 = vunpack.c.l.b16 %v2349
    %v2660 = vunpack.c.h.b16 %v2349
    %v2661 = vunpack.c.l.b16 %v2350
    %v2662 = vunpack.c.h.b16 %v2350
    %v2663 = vunpack.c.l.b16 %v2351
    %v2664 = vunpack.c.h.b16 %v2351
    %v2665 = vunpack.c.l.b16 %v2352
    %v2666 = vunpack.c.h.b16 %v2352
    %v2667 = vunpack.c.l.b16 %v2353
    %v2668 = vunpack.c.h.b16 %v2353
    %v2669 = vunpack.c.l.b16 %v2354
    %v2670 = vunpack.c.h.b16 %v2354
    %v2671 = vunpack.c.l.b16 %v2355
    %v2672 = vunpack.c.h.b16 %v2355
    %v2673 = vunpack.c.l.b16 %v2356
    %v2674 = vunpack.c.h.b16 %v2356
    %v2675 = vunpack.c.l.b16 %v2357
    %v2676 = vunpack.c.h.b16 %v2357
    %v2677 = vunpack.c.l.b16 %v2358
    %v2678 = vunpack.c.h.b16 %v2358
    %v2679 = vunpack.c.l.b16 %v2359
    %v2680 = vunpack.c.h.b16 %v2359
    %v2681 = vunpack.c.l.b16 %v2360
    %v2682 = vunpack.c.h.b16 %v2360
    %v2683 = vunpack.c.l.b16 %v2361
    %v2684 = vunpack.c.h.b16 %v2361
    %v2685 = vunpack.c.l.b16 %v2362
    %v2686 = vunpack.c.h.b16 %v2362
    %v2687 = vunpack.c.l.b16 %v2363
    %v2688 = vunpack.c.h.b16 %v2363
    %v2689 = vunpack.c.l.b16 %v2364
    %v2690 = vunpack.c.h.b16 %v2364
    %v2691 = vunpack.c.l.b16 %v2365
    %v2692 = vunpack.c.h.b16 %v2365
    %v2693 = vunpack.c.l.b16 %v2366
    %v2694 = vunpack.c.h.b16 %v2366
    %v2695 = vunpack.c.l.b16 %v2367
    %v2696 = vunpack.c.h.b16 %v2367
    %v2697 = vunpack.c.l.b16 %v2368
    %v2698 = vunpack.c.h.b16 %v2368
    %v2699 = vunpack.c.l.b16 %v2369
    %v2700 = vunpack.c.h.b16 %v2369
    %v2701 = vunpack.c.l.b16 %v2370
    %v2702 = vunpack.c.h.b16 %v2370
    %v2703 = vunpack.c.l.b16 %v2371
    %v2704 = vunpack.c.h.b16 %v2371
    %v2705 = vunpack.c.l.b16 %v2372
    %v2706 = vunpack.c.h.b16 %v2372
    %v2707 = vunpack.c.l.b16 %v2373
    %v2708 = vunpack.c.h.b16 %v2373
    %v2709 = vunpack.c.l.b16 %v2374
    %v2710 = vunpack.c.h.b16 %v2374
    %v2711 = vunpack.c.l.b16 %v2375
    %v2712 = vunpack.c.h.b16 %v2375
    %v2713 = vunpack.c.l.b16 %v2376
    %v2714 = vunpack.c.h.b16 %v2376
    %v2715 = vunpack.c.l.b16 %v2377
    %v2716 = vunpack.c.h.b16 %v2377
    %v2717 = vunpack.c.l.b16 %v2378
    %v2718 = vunpack.c.h.b16 %v2378
    %v2719 = vunpack.c.l.b16 %v2379
    %v2720 = vunpack.c.h.b16 %v2379
    %v2721 = vunpack.c.l.b16 %v2380
    %v2722 = vunpack.c.h.b16 %v2380
    %v2723 = vunpack.c.l.b16 %v2381
    %v2724 = vunpack.c.h.b16 %v2381
    %v2725 = vunpack.c.l.b16 %v2382
    %v2726 = vunpack.c.h.b16 %v2382
    %v2727 = vunpack.c.l.b16 %v2383
    %v2728 = vunpack.c.h.b16 %v2383
    %v2729 = vunpack.c.l.b16 %v2384
    %v2730 = vunpack.c.h.b16 %v2384
    %v2731 = vunpack.c.l.b16 %v2385
    %v2732 = vunpack.c.h.b16 %v2385
    %v2733 = vunpack.c.l.b16 %v2386
    %v2734 = vunpack.c.h.b16 %v2386
    %v2735 = vunpack.c.l.b16 %v2387
    %v2736 = vunpack.c.h.b16 %v2387
    %v2737 = vunpack.c.l.b16 %v2388
    %v2738 = vunpack.c.h.b16 %v2388
    %v2739 = vunpack.c.l.b16 %v2389
    %v2740 = vunpack.c.h.b16 %v2389
    %v2741 = vunpack.c.l.b16 %v2390
    %v2742 = vunpack.c.h.b16 %v2390
    %v2743 = vunpack.c.l.b16 %v2391
    %v2744 = vunpack.c.h.b16 %v2391
    %v2745 = vunpack.c.l.b16 %v2392
    %v2746 = vunpack.c.h.b16 %v2392
    %v2747 = vunpack.c.l.b16 %v2393
    %v2748 = vunpack.c.h.b16 %v2393
    %v2749 = vunpack.c.l.b16 %v2394
    %v2750 = vunpack.c.h.b16 %v2394
    %v2751 = vunpack.c.l.b16 %v2395
    %v2752 = vunpack.c.h.b16 %v2395
    %v2753 = vunpack.c.l.b16 %v2396
    %v2754 = vunpack.c.h.b16 %v2396
    %v2755 = vunpack.c.l.b16 %v2397
    %v2756 = vunpack.c.h.b16 %v2397
    %v2757 = vunpack.c.l.b16 %v2398
    %v2758 = vunpack.c.h.b16 %v2398
    %v2759 = vunpack.c.l.b16 %v2399
    %v2760 = vunpack.c.h.b16 %v2399
    %v2761 = vunpack.c.l.b16 %v2400
    %v2762 = vunpack.c.h.b16 %v2400
    %v2763 = vunpack.c.l.b16 %v2401
    %v2764 = vunpack.c.h.b16 %v2401
    %v2765 = vunpack.c.l.b16 %v2402
    %v2766 = vunpack.c.h.b16 %v2402
    %v2767 = vunpack.c.l.b16 %v2403
    %v2768 = vunpack.c.h.b16 %v2403
    %v2769 = vunpack.c.l.b16 %v2404
    %v2770 = vunpack.c.h.b16 %v2404
    %v2771 = vunpack.c.l.b16 %v2405
    %v2772 = vunpack.c.h.b16 %v2405
    %v2773 = vunpack.c.l.b16 %v2406
    %v2774 = vunpack.c.h.b16 %v2406
    %v2775 = vunpack.c.l.b16 %v2407
    %v2776 = vunpack.c.h.b16 %v2407
    %v2777 = vunpack.c.l.b16 %v2408
    %v2778 = vunpack.c.h.b16 %v2408
    %v2779 = vunpack.c.l.b16 %v2409
    %v2780 = vunpack.c.h.b16 %v2409
    %v2781 = vunpack.c.l.b16 %v2410
    %v2782 = vunpack.c.h.b16 %v2410
    %v2783 = vunpack.c.l.b16 %v2411
    %v2784 = vunpack.c.h.b16 %v2411
    %v2785 = vunpack.c.l.b16 %v2412
    %v2786 = vunpack.c.h.b16 %v2412
    %v2787 = vunpack.c.l.b16 %v2413
    %v2788 = vunpack.c.h.b16 %v2413
    %v2789 = vunpack.c.l.b16 %v2414
    %v2790 = vunpack.c.h.b16 %v2414
    %v2791 = vunpack.c.l.b16 %v2415
    %v2792 = vunpack.c.h.b16 %v2415
    %v2793 = vunpack.c.l.b16 %v2416
    %v2794 = vunpack.c.h.b16 %v2416
    %v2795 = vunpack.c.l.b16 %v2417
    %v2796 = vunpack.c.h.b16 %v2417
    %v2797 = vunpack.c.l.b16 %v2418
    %v2798 = vunpack.c.h.b16 %v2418
    %v2799 = vunpack.c.l.b16 %v2419
    %v2800 = vunpack.c.h.b16 %v2419
    %v2801 = vunpack.c.l.b16 %v2420
    %v2802 = vunpack.c.h.b16 %v2420
    %v2803 = vunpack.c.l.b16 %v2421
    %v2804 = vunpack.c.h.b16 %v2421
    %v2805 = vunpack.c.l.b16 %v2422
    %v2806 = vunpack.c.h.b16 %v2422
    %v2807 = vunpack.c.l.b16 %v2423
    %v2808 = vunpack.c.h.b16 %v2423
    %v2809 = vunpack.c.l.b16 %v2424
    %v2810 = vunpack.c.h.b16 %v2424
    %v2811 = vunpack.c.l.b16 %v2425
    %v2812 = vunpack.c.h.b16 %v2425
    %v2813 = vunpack.c.l.b16 %v2426
    %v2814 = vunpack.c.h.b16 %v2426
    %v2815 = vunpack.c.l.b16 %v2427
    %v2816 = vunpack.c.h.b16 %v2427
    %v2817 = vunpack.c.l.b16 %v2428
    %v2818 = vunpack.c.h.b16 %v2428
    %v2819 = vunpack.c.l.b16 %v2429
    %v2820 = vunpack.c.h.b16 %v2429
    %v2821 = vunpack.c.l.b16 %v2430
    %v2822 = vunpack.c.h.b16 %v2430
    %v2823 = vunpack.c.l.b16 %v2431
    %v2824 = vunpack.c.h.b16 %v2431
    %v2825 = vunpack.c.l.b16 %v2432
    %v2826 = vunpack.c.h.b16 %v2432
    %v2827 = vunpack.c.l.b16 %v2433
    %v2828 = vunpack.c.h.b16 %v2433
    %v2829 = vunpack.c.l.b16 %v2434
    %v2830 = vunpack.c.h.b16 %v2434
    %v2831 = vpack.c.b16 %v2577, %v2575
    %v2832 = vpack.c.b16 %v2578, %v2576
    %v2833 = vpack.c.b16 %v2581, %v2579
    %v2834 = vpack.c.b16 %v2582, %v2580
    %v2835 = vpack.c.b16 %v2585, %v2583
    %v2836 = vpack.c.b16 %v2586, %v2584
    %v2837 = vpack.c.b16 %v2589, %v2587
    %v2838 = vpack.c.b16 %v2590, %v2588
    %v2839 = vpack.c.b16 %v2593, %v2591
    %v2840 = vpack.c.b16 %v2594, %v2592
    %v2841 = vpack.c.b16 %v2597, %v2595
    %v2842 = vpack.c.b16 %v2598, %v2596
    %v2843 = vpack.c.b16 %v2601, %v2599
    %v2844 = vpack.c.b16 %v2602, %v2600
    %v2845 = vpack.c.b16 %v2605, %v2603
    %v2846 = vpack.c.b16 %v2606, %v2604
    %v2847 = vpack.c.b16 %v2609, %v2607
    %v2848 = vpack.c.b16 %v2610, %v2608
    %v2849 = vpack.c.b16 %v2613, %v2611
    %v2850 = vpack.c.b16 %v2614, %v2612
    %v2851 = vpack.c.b16 %v2617, %v2615
    %v2852 = vpack.c.b16 %v2618, %v2616
    %v2853 = vpack.c.b16 %v2621, %v2619
    %v2854 = vpack.c.b16 %v2622, %v2620
    %v2855 = vpack.c.b16 %v2625, %v2623
    %v2856 = vpack.c.b16 %v2626, %v2624
    %v2857 = vpack.c.b16 %v2629, %v2627
    %v2858 = vpack.c.b16 %v2630, %v2628
    %v2859 = vpack.c.b16 %v2633, %v2631
    %v2860 = vpack.c.b16 %v2634, %v2632
    %v2861 = vpack.c.b16 %v2637, %v2635
    %v2862 = vpack.c.b16 %v2638, %v2636
    %v2863 = vpack.c.b16 %v2641, %v2639
    %v2864 = vpack.c.b16 %v2642, %v2640
    %v2865 = vpack.c.b16 %v2645, %v2643
    %v2866 = vpack.c.b16 %v2646, %v2644
    %v2867 = vpack.c.b16 %v2649, %v2647
    %v2868 = vpack.c.b16 %v2650, %v2648
    %v2869 = vpack.c.b16 %v2653, %v2651
    %v2870 = vpack.c.b16 %v2654, %v2652
    %v2871 = vpack.c.b16 %v2657, %v2655
    %v2872 = vpack.c.b16 %v2658, %v2656
    %v2873 = vpack.c.b16 %v2661, %v2659
    %v2874 = vpack.c.b16 %v2662, %v2660
    %v2875 = vpack.c.b16 %v2665, %v2663
    %v2876 = vpack.c.b16 %v2666, %v2664
    %v2877 = vpack.c.b16 %v2669, %v2667
    %v2878 = vpack.c.b16 %v2670, %v2668
    %v2879 = vpack.c.b16 %v2673, %v2671
    %v2880 = vpack.c.b16 %v2674, %v2672
    %v2881 = vpack.c.b16 %v2677, %v2675
    %v2882 = vpack.c.b16 %v2678, %v2676
    %v2883 = vpack.c.b16 %v2681, %v2679
    %v2884 = vpack.c.b16 %v2682, %v2680
    %v2885 = vpack.c.b16 %v2685, %v2683
    %v2886 = vpack.c.b16 %v2686, %v2684
    %v2887 = vpack.c.b16 %v2689, %v2687
    %v2888 = vpack.c.b16 %v2690, %v2688
    %v2889 = vpack.c.b16 %v2693, %v2691
    %v2890 = vpack.c.b16 %v2694, %v2692
    %v2891 = vpack.c.b16 %v2697, %v2695
    %v2892 = vpack.c.b16 %v2698, %v2696
    %v2893 = vpack.c.b16 %v2701, %v2699
    %v2894 = vpack.c.b16 %v2702, %v2700
    %v2895 = vpack.c.b16 %v2705, %v2703
    %v2896 = vpack.c.b16 %v2706, %v2704
    %v2897 = vpack.c.b16 %v2709, %v2707
    %v2898 = vpack.c.b16 %v2710, %v2708
    %v2899 = vpack.c.b16 %v2713, %v2711
    %v2900 = vpack.c.b16 %v2714, %v2712
    %v2901 = vpack.c.b16 %v2717, %v2715
    %v2902 = vpack.c.b16 %v2718, %v2716
    %v2903 = vpack.c.b16 %v2721, %v2719
    %v2904 = vpack.c.b16 %v2722, %v2720
    %v2905 = vpack.c.b16 %v2725, %v2723
    %v2906 = vpack.c.b16 %v2726, %v2724
    %v2907 = vpack.c.b16 %v2729, %v2727
    %v2908 = vpack.c.b16 %v2730, %v2728
    %v2909 = vpack.c.b16 %v2733, %v2731
    %v2910 = vpack.c.b16 %v2734, %v2732
    %v2911 = vpack.c.b16 %v2737, %v2735
    %v2912 = vpack.c.b16 %v2738, %v2736
    %v2913 = vpack.c.b16 %v2741, %v2739
    %v2914 = vpack.c.b16 %v2742, %v2740
    %v2915 = vpack.c.b16 %v2745, %v2743
    %v2916 = vpack.c.b16 %v2746, %v2744
    %v2917 = vpack.c.b16 %v2749, %v2747
    %v2918 = vpack.c.b16 %v2750, %v2748
    %v2919 = vpack.c.b16 %v2753, %v2751
    %v2920 = vpack.c.b16 %v2754, %v2752
    %v2921 = vpack.c.b16 %v2757, %v2755
    %v2922 = vpack.c.b16 %v2758, %v2756
    %v2923 = vpack.c.b16 %v2761, %v2759
    %v2924 = vpack.c.b16 %v2762, %v2760
    %v2925 = vpack.c.b16 %v2765, %v2763
    %v2926 = vpack.c.b16 %v2766, %v2764
    %v2927 = vpack.c.b16 %v2769, %v2767
    %v2928 = vpack.c.b16 %v2770, %v2768
    %v2929 = vpack.c.b16 %v2773, %v2771
    %v2930 = vpack.c.b16 %v2774, %v2772
    %v2931 = vpack.c.b16 %v2777, %v2775
    %v2932 = vpack.c.b16 %v2778, %v2776
    %v2933 = vpack.c.b16 %v2781, %v2779
    %v2934 = vpack.c.b16 %v2782, %v2780
    %v2935 = vpack.c.b16 %v2785, %v2783
    %v2936 = vpack.c.b16 %v2786, %v2784
    %v2937 = vpack.c.b16 %v2789, %v2787
    %v2938 = vpack.c.b16 %v2790, %v2788
    %v2939 = vpack.c.b16 %v2793, %v2791
    %v2940 = vpack.c.b16 %v2794, %v2792
    %v2941 = vpack.c.b16 %v2797, %v2795
    %v2942 = vpack.c.b16 %v2798, %v2796
    %v2943 = vpack.c.b16 %v2801, %v2799
    %v2944 = vpack.c.b16 %v2802, %v2800
    %v2945 = vpack.c.b16 %v2805, %v2803
    %v2946 = vpack.c.b16 %v2806, %v2804
    %v2947 = vpack.c.b16 %v2809, %v2807
    %v2948 = vpack.c.b16 %v2810, %v2808
    %v2949 = vpack.c.b16 %v2813, %v2811
    %v2950 = vpack.c.b16 %v2814, %v2812
    %v2951 = vpack.c.b16 %v2817, %v2815
    %v2952 = vpack.c.b16 %v2818, %v2816
    %v2953 = vpack.c.b16 %v2821, %v2819
    %v2954 = vpack.c.b16 %v2822, %v2820
    %v2955 = vpack.c.b16 %v2825, %v2823
    %v2956 = vpack.c.b16 %v2826, %v2824
    %v2957 = vpack.c.b16 %v2829, %v2827
    %v2958 = vpack.c.b16 %v2830, %v2828
    %3087 = vmatprep.subr.bf16.mxu0 %v2832
    %3088 = vmatpush1.bf16.msra.mxu0 %v2831
    %3089 = vmatprep.subr.bf16.mxu0 %v2834
    %3090 = vmatpush1.bf16.msra.mxu0 %v2833
    %3091 = vmatprep.subr.bf16.mxu0 %v2836
    %3092 = vmatpush1.bf16.msra.mxu0 %v2835
    %3093 = vmatprep.subr.bf16.mxu0 %v2838
    %3094 = vmatpush1.bf16.msra.mxu0 %v2837
    %3095 = vmatprep.subr.bf16.mxu0 %v2840
    %3096 = vmatpush1.bf16.msra.mxu0 %v2839
    %3097 = vmatprep.subr.bf16.mxu0 %v2842
    %3098 = vmatpush1.bf16.msra.mxu0 %v2841
    %3099 = vmatprep.subr.bf16.mxu0 %v2844
    %3100 = vmatpush1.bf16.msra.mxu0 %v2843
    %3101 = vmatprep.subr.bf16.mxu0 %v2846
    %3102 = vmatpush1.bf16.msra.mxu0 %v2845
    %3103 = vmatprep.subr.bf16.mxu0 %v2848
    %3104 = vmatpush1.bf16.msra.mxu0 %v2847
    %3105 = vmatprep.subr.bf16.mxu0 %v2850
    %3106 = vmatpush1.bf16.msra.mxu0 %v2849
    %3107 = vmatprep.subr.bf16.mxu0 %v2852
    %3108 = vmatpush1.bf16.msra.mxu0 %v2851
    %3109 = vmatprep.subr.bf16.mxu0 %v2854
    %3110 = vmatpush1.bf16.msra.mxu0 %v2853
    %3111 = vmatprep.subr.bf16.mxu0 %v2856
    %3112 = vmatpush1.bf16.msra.mxu0 %v2855
    %3113 = vmatprep.subr.bf16.mxu0 %v2858
    %3114 = vmatpush1.bf16.msra.mxu0 %v2857
    %3115 = vmatprep.subr.bf16.mxu0 %v2860
    %3116 = vmatpush1.bf16.msra.mxu0 %v2859
    %3117 = vmatprep.subr.bf16.mxu0 %v2862
    %3118 = vmatpush1.bf16.msra.mxu0 %v2861
    %3119 = vmatprep.mubr.bf16.mxu0 %v2300
    %3120 = vmatmul.mubr.bf16.gmra.mrb[0].mxu0 %v2299
    %v3121 = vpop.f32.mrb[0].mxu0
    %v3122 = vadd.f32 %v2440, %v3121
    %v3123 = vpop.f32.mrb[0].mxu0
    %v3124 = vadd.f32 %v2444, %v3123
    %v3125 = vpop.f32.mrb[0].mxu0
    %v3126 = vpop.f32.mrb[0].mxu0
    %3127 = vdwg.mxu0
    %3128 = vmatprep.subr.bf16.mxu0 %v2864
    %3129 = vmatpush1.bf16.msra.mxu0 %v2863
    %3130 = vmatprep.subr.bf16.mxu0 %v2866
    %3131 = vmatpush1.bf16.msra.mxu0 %v2865
    %3132 = vmatprep.subr.bf16.mxu0 %v2868
    %3133 = vmatpush1.bf16.msra.mxu0 %v2867
    %3134 = vmatprep.subr.bf16.mxu0 %v2870
    %3135 = vmatpush1.bf16.msra.mxu0 %v2869
    %3136 = vmatprep.subr.bf16.mxu0 %v2872
    %3137 = vmatpush1.bf16.msra.mxu0 %v2871
    %3138 = vmatprep.subr.bf16.mxu0 %v2874
    %3139 = vmatpush1.bf16.msra.mxu0 %v2873
    %3140 = vmatprep.subr.bf16.mxu0 %v2876
    %3141 = vmatpush1.bf16.msra.mxu0 %v2875
    %3142 = vmatprep.subr.bf16.mxu0 %v2878
    %3143 = vmatpush1.bf16.msra.mxu0 %v2877
    %3144 = vmatprep.subr.bf16.mxu0 %v2880
    %3145 = vmatpush1.bf16.msra.mxu0 %v2879
    %3146 = vmatprep.subr.bf16.mxu0 %v2882
    %3147 = vmatpush1.bf16.msra.mxu0 %v2881
    %3148 = vmatprep.subr.bf16.mxu0 %v2884
    %3149 = vmatpush1.bf16.msra.mxu0 %v2883
    %3150 = vmatprep.subr.bf16.mxu0 %v2886
    %3151 = vmatpush1.bf16.msra.mxu0 %v2885
    %3152 = vmatprep.subr.bf16.mxu0 %v2888
    %3153 = vmatpush1.bf16.msra.mxu0 %v2887
    %3154 = vmatprep.subr.bf16.mxu0 %v2890
    %3155 = vmatpush1.bf16.msra.mxu0 %v2889
    %3156 = vmatprep.subr.bf16.mxu0 %v2892
    %3157 = vmatpush1.bf16.msra.mxu0 %v2891
    %3158 = vmatprep.subr.bf16.mxu0 %v2894
    %3159 = vmatpush1.bf16.msra.mxu0 %v2893
    %3160 = vmatprep.mubr.bf16.mxu0 %v2302
    %3161 = vmatmul.mubr.bf16.gmra.mrb[0].mxu0 %v2301
    %v3162 = vpop.f32.mrb[0].mxu0
    %v3163 = vadd.f32 %v3122, %v3162
    %v3164 = vpop.f32.mrb[0].mxu0
    %v3165 = vadd.f32 %v3124, %v3164
    %v3166 = vpop.f32.mrb[0].mxu0
    %v3167 = vpop.f32.mrb[0].mxu0
    %3168 = vdwg.mxu0
    %3169 = vmatprep.subr.bf16.mxu0 %v2896
    %3170 = vmatpush1.bf16.msra.mxu0 %v2895
    %3171 = vmatprep.subr.bf16.mxu0 %v2898
    %3172 = vmatpush1.bf16.msra.mxu0 %v2897
    %3173 = vmatprep.subr.bf16.mxu0 %v2900
    %3174 = vmatpush1.bf16.msra.mxu0 %v2899
    %3175 = vmatprep.subr.bf16.mxu0 %v2902
    %3176 = vmatpush1.bf16.msra.mxu0 %v2901
    %3177 = vmatprep.subr.bf16.mxu0 %v2904
    %3178 = vmatpush1.bf16.msra.mxu0 %v2903
    %3179 = vmatprep.subr.bf16.mxu0 %v2906
    %3180 = vmatpush1.bf16.msra.mxu0 %v2905
    %3181 = vmatprep.subr.bf16.mxu0 %v2908
    %3182 = vmatpush1.bf16.msra.mxu0 %v2907
    %3183 = vmatprep.subr.bf16.mxu0 %v2910
    %3184 = vmatpush1.bf16.msra.mxu0 %v2909
    %3185 = vmatprep.subr.bf16.mxu0 %v2912
    %3186 = vmatpush1.bf16.msra.mxu0 %v2911
    %3187 = vmatprep.subr.bf16.mxu0 %v2914
    %3188 = vmatpush1.bf16.msra.mxu0 %v2913
    %3189 = vmatprep.subr.bf16.mxu0 %v2916
    %3190 = vmatpush1.bf16.msra.mxu0 %v2915
    %3191 = vmatprep.subr.bf16.mxu0 %v2918
    %3192 = vmatpush1.bf16.msra.mxu0 %v2917
    %3193 = vmatprep.subr.bf16.mxu0 %v2920
    %3194 = vmatpush1.bf16.msra.mxu0 %v2919
    %3195 = vmatprep.subr.bf16.mxu0 %v2922
    %3196 = vmatpush1.bf16.msra.mxu0 %v2921
    %3197 = vmatprep.subr.bf16.mxu0 %v2924
    %3198 = vmatpush1.bf16.msra.mxu0 %v2923
    %3199 = vmatprep.subr.bf16.mxu0 %v2926
    %3200 = vmatpush1.bf16.msra.mxu0 %v2925
    %3201 = vmatprep.mubr.bf16.mxu0 %v2304
    %3202 = vmatmul.mubr.bf16.gmra.mrb[0].mxu0 %v2303
    %v3203 = vpop.f32.mrb[0].mxu0
    %v3204 = vadd.f32 %v3163, %v3203
    %v3205 = vpop.f32.mrb[0].mxu0
    %v3206 = vadd.f32 %v3165, %v3205
    %v3207 = vpop.f32.mrb[0].mxu0
    %v3208 = vpop.f32.mrb[0].mxu0
    %3209 = vdwg.mxu0
    %3210 = vmatprep.subr.bf16.mxu0 %v2928
    %3211 = vmatpush1.bf16.msra.mxu0 %v2927
    %3212 = vmatprep.subr.bf16.mxu0 %v2930
    %3213 = vmatpush1.bf16.msra.mxu0 %v2929
    %3214 = vmatprep.subr.bf16.mxu0 %v2932
    %3215 = vmatpush1.bf16.msra.mxu0 %v2931
    %3216 = vmatprep.subr.bf16.mxu0 %v2934
    %3217 = vmatpush1.bf16.msra.mxu0 %v2933
    %3218 = vmatprep.subr.bf16.mxu0 %v2936
    %3219 = vmatpush1.bf16.msra.mxu0 %v2935
    %3220 = vmatprep.subr.bf16.mxu0 %v2938
    %3221 = vmatpush1.bf16.msra.mxu0 %v2937
    %3222 = vmatprep.subr.bf16.mxu0 %v2940
    %3223 = vmatpush1.bf16.msra.mxu0 %v2939
    %3224 = vmatprep.subr.bf16.mxu0 %v2942
    %3225 = vmatpush1.bf16.msra.mxu0 %v2941
    %3226 = vmatprep.subr.bf16.mxu0 %v2944
    %3227 = vmatpush1.bf16.msra.mxu0 %v2943
    %3228 = vmatprep.subr.bf16.mxu0 %v2946
    %3229 = vmatpush1.bf16.msra.mxu0 %v2945
    %3230 = vmatprep.subr.bf16.mxu0 %v2948
    %3231 = vmatpush1.bf16.msra.mxu0 %v2947
    %3232 = vmatprep.subr.bf16.mxu0 %v2950
    %3233 = vmatpush1.bf16.msra.mxu0 %v2949
    %3234 = vmatprep.subr.bf16.mxu0 %v2952
    %3235 = vmatpush1.bf16.msra.mxu0 %v2951
    %3236 = vmatprep.subr.bf16.mxu0 %v2954
    %3237 = vmatpush1.bf16.msra.mxu0 %v2953
    %3238 = vmatprep.subr.bf16.mxu0 %v2956
    %3239 = vmatpush1.bf16.msra.mxu0 %v2955
    %3240 = vmatprep.subr.bf16.mxu0 %v2958
    %3241 = vmatpush1.bf16.msra.mxu0 %v2957
    %3242 = vmatprep.mubr.bf16.mxu0 %v2306
    %3243 = vmatmul.mubr.bf16.gmra.mrb[0].mxu0 %v2305
    %v3244 = vpop.f32.mrb[0].mxu0
    %v3245 = vadd.f32 %v3204, %v3244
    %v3246 = vpop.f32.mrb[0].mxu0
    %v3247 = vadd.f32 %v3206, %v3246
    %v3248 = vpop.f32.mrb[0].mxu0
    %v3249 = vpop.f32.mrb[0].mxu0
    %3250 = vdwg.mxu0
    %v3251 = vxor.u32 %v3245, 2147483648
    %v3252 = vxor.u32 %v3247, 2147483648
    %v3253 = vmul.f32 %v3251, 1.442695
    %v3254 = vpow.pop %v3253
    %v3255 = vmul.f32 %v3252, 1.442695
    %v3256 = vpow.pop %v3255
    %v3257 = vadd.f32 %v3254, 1.0
    %v3258 = vadd.f32 %v3256, 1.0
    %v3259 = vrcp.pop %v3257
    %v3260 = vmul.f32 1.0, %v3259
    %v3261 = vrcp.pop %v3258
    %v3262 = vmul.f32 1.0, %v3261
    %3263 = vst [vmem:[%s7] sm:$0xff] %v3260
    %3264 = vst [vmem:[%s7 + $0x8] sm:$0xff] %v3262
    // Predicated region
    $region46: #{decoder_forward.1} parent=1 // pred_check
      _
    $region47: #{decoder_forward.1} parent=1 // pred_check_branch
      %3266 = sbr.rel (0) target = $region49
    $region48: #{decoder_forward.1} parent=1 // pred_region
      _
    $region49: #{decoder_forward.1} parent=1 // pred_fallthru
      _
    // Predicated region
    $region50: #{decoder_forward.1} parent=1 // pred_check
      _
    $region51: #{decoder_forward.1} parent=1 // pred_check_branch
      %3268 = sbr.rel (0) target = $region53
    $region52: #{decoder_forward.1} parent=1 // pred_region
      _
    $region53: #{decoder_forward.1} parent=1 // pred_fallthru
      _
    %3269 = vsyncpa [#allocation3], 1
    %3270 = vsyncpa [#allocation5], 1
    %3271 = vsyncpa [#allocation8], 1

</llo_original>
